<compile_context>
chip_gen: v6e
topology: v6e:2x2x1
jax: 0.10.0
libtpu: 0.0.40
codegen_flags: <defaults>
</compile_context>

<pallas_src>
import jax
import jax.numpy as jnp
from jax import lax
from jax.experimental import pallas as pl
from jax.experimental.pallas import tpu as pltpu


def _round_up(n, m):
    return ((n + m - 1) // m) * m


# ----------------------- fused backbone + head + loss -----------------------

def _make_fused_kernel(n_hidden, nk, B, d_logical, sim_coeff, std_coeff,
                       cov_coeff):
    sim_coeff = float(sim_coeff)
    std_coeff = float(std_coeff)
    cov_coeff = float(cov_coeff)
    d_logical = int(d_logical)

    def kernel(*refs):
        xa_ref, xb_ref, bw_ref, bb_ref = refs[0], refs[1], refs[2], refs[3]
        hidden = refs[4:4 + 4 * n_hidden]
        wf_ref = refs[4 + 4 * n_hidden]
        o_ref = refs[5 + 4 * n_hidden]
        acc_a = refs[6 + 4 * n_hidden]
        acc_b = refs[7 + 4 * n_hidden]

        k = pl.program_id(0)

        @pl.when(k == 0)
        def _init():
            acc_a[...] = jnp.zeros_like(acc_a)
            acc_b[...] = jnp.zeros_like(acc_b)

        # K-tiled backbone matmul.  Activations arrive as f32 tiles and are
        # cast to bf16 in-register; accumulation stays f32 in VMEM scratch.
        w = bw_ref[...]
        acc_a[...] += jnp.dot(xa_ref[...].astype(w.dtype), w,
                              preferred_element_type=jnp.float32)
        acc_b[...] += jnp.dot(xb_ref[...].astype(w.dtype), w,
                              preferred_element_type=jnp.float32)

        @pl.when(k == nk - 1)
        def _epilogue():
            def head(acc):
                h = acc + bb_ref[...]                       # (B, d0) f32
                for li in range(n_hidden):
                    w_l = hidden[4 * li][...]
                    b_l = hidden[4 * li + 1][...]
                    g_l = hidden[4 * li + 2][...]
                    be_l = hidden[4 * li + 3][...]
                    z = jnp.dot(h.astype(w_l.dtype), w_l,
                                preferred_element_type=jnp.float32) + b_l
                    # BatchNorm1d, training mode: biased batch var, eps=1e-5.
                    mean = jnp.mean(z, axis=0, keepdims=True)
                    d = z - mean
                    var = jnp.mean(d * d, axis=0, keepdims=True)
                    h = jnp.maximum(d * lax.rsqrt(var + 1e-5) * g_l + be_l,
                                    0.0)
                wf = wf_ref[...]
                return jnp.dot(h.astype(wf.dtype), wf,
                               preferred_element_type=jnp.float32)

            x = head(acc_a[...])                            # view A (B, Dpad)
            y = head(acc_b[...])                            # view B (B, Dpad)
            dpad = x.shape[1]

            # Invariance (MSE); padded lanes are exactly zero in x and y.
            repr_loss = jnp.sum((x - y) ** 2) / (B * d_logical)

            xc = x - jnp.mean(x, axis=0, keepdims=True)
            yc = y - jnp.mean(y, axis=0, keepdims=True)

            # Variance term: unbiased var (/(B-1)), eps=1e-4 inside sqrt.
            var_x = jnp.sum(xc * xc, axis=0, keepdims=True) / (B - 1)
            var_y = jnp.sum(yc * yc, axis=0, keepdims=True) / (B - 1)
            std_x = jnp.sqrt(var_x + 1e-4)
            std_y = jnp.sqrt(var_y + 1e-4)
            lane_mask = (lax.broadcasted_iota(jnp.int32, (1, dpad), 1)
                         < d_logical).astype(jnp.float32)
            std_loss = (jnp.sum(jnp.maximum(1.0 - std_x, 0.0) * lane_mask)
                        + jnp.sum(jnp.maximum(1.0 - std_y, 0.0) * lane_mask)
                        ) / (2.0 * d_logical)

            # Covariance term via the BxB Gram trick:
            #   sum(cov^2) = ||Xc Xc^T||_F^2 / (B-1)^2
            # off-diag = total - diagonal, diag(cov) == unbiased var above.
            dn = (((1,), (1,)), ((), ()))                   # contract feature
            gx = lax.dot_general(xc, xc, dn,
                                 preferred_element_type=jnp.float32)
            gy = lax.dot_general(yc, yc, dn,
                                 preferred_element_type=jnp.float32)
            inv_bm1_sq = 1.0 / float((B - 1) * (B - 1))
            cov_loss = ((jnp.sum(gx * gx) * inv_bm1_sq
                         - jnp.sum(var_x * var_x))
                        + (jnp.sum(gy * gy) * inv_bm1_sq
                           - jnp.sum(var_y * var_y))) / d_logical

            o_ref[0, 0] = (sim_coeff * repr_loss
                           + std_coeff * std_loss
                           + cov_coeff * cov_loss)

    return kernel


def fused_vicreg(xa, xb, params, *, d_out_logical, sim_coeff, std_coeff,
                 cov_coeff, tile_k):
    """xa, xb: (B, Din_pad) f32 flattened views. Returns scalar loss."""
    B, din_pad = xa.shape
    bw, bb = params["backbone_w"], params["backbone_b"]
    hidden = params["hidden"]
    wf = params["final_w"]
    d0 = bw.shape[1]
    d_out_pad = wf.shape[1]
    n_hidden = len(hidden)
    nk = din_pad // tile_k

    vmem = pltpu.MemorySpace.VMEM

    # Backbone weight is the only pipelined stream; deepen it when there are
    # enough K steps to benefit (mainly v5e's lower HBM bandwidth).
    if nk >= 3:
        bw_spec = pl.BlockSpec((tile_k, d0), lambda k: (k, 0),
                               pipeline_mode=pl.Buffered(3))
        bw_bufs = 3
    else:
        bw_spec = pl.BlockSpec((tile_k, d0), lambda k: (k, 0))
        bw_bufs = min(2, nk)

    in_specs = [
        pl.BlockSpec((B, tile_k), lambda k: (0, k)),   # view A, K-tiled f32
        pl.BlockSpec((B, tile_k), lambda k: (0, k)),   # view B, K-tiled f32
        bw_spec,                                        # backbone weight bf16
        pl.BlockSpec(memory_space=vmem),                # backbone bias (resident)
    ]
    args = [xa, xb, bw, bb]
    param_bytes = bb.size * bb.dtype.itemsize
    for layer in hidden:
        for name in ("w", "b", "gamma", "beta"):
            a = layer[name]
            in_specs.append(pl.BlockSpec(memory_space=vmem))  # single copy
            args.append(a)
            param_bytes += a.size * a.dtype.itemsize
    in_specs.append(pl.BlockSpec(memory_space=vmem))
    args.append(wf)
    param_bytes += wf.size * wf.dtype.itemsize

    # Generation-aware VMEM budget: estimate the working set, set an explicit
    # scoped limit with headroom, capped below physical VMEM (v7x = 64 MiB).
    est = (2 * 2 * B * tile_k * 4            # two double-buffered x streams
           + bw_bufs * tile_k * d0 * 2       # weight stream buffers
           + param_bytes                     # resident head parameters
           + 2 * B * d0 * 4                  # accumulators
           + 4 * B * d_out_pad * 4)          # epilogue intermediates
    try:
        cap = int(pltpu.get_tpu_info().vmem_capacity_bytes) * 7 // 8
    except Exception:
        cap = 56 * 1024 * 1024
    vmem_limit = int(min(max(2 * est, 32 * 1024 * 1024), cap))

    # Cost hint for XLA scheduling (backbone matmul dominates).
    flops = 2 * (2 * B) * din_pad * d0
    prev = d0
    for layer in hidden:
        n = layer["w"].shape[1]
        flops += 2 * (2 * B) * prev * n
        prev = n
    flops += 2 * (2 * B) * prev * d_out_pad
    flops += 2 * 2 * B * B * d_out_pad                    # Gram matmuls
    bytes_accessed = 2 * B * din_pad * 4 + bw.size * 2 + param_bytes + 4

    out = pl.pallas_call(
        _make_fused_kernel(n_hidden, nk, B, d_out_logical,
                           sim_coeff, std_coeff, cov_coeff),
        out_shape=jax.ShapeDtypeStruct((1, 1), jnp.float32),
        grid_spec=pltpu.PrefetchScalarGridSpec(
            num_scalar_prefetch=0,
            grid=(nk,),
            in_specs=in_specs,
            out_specs=pl.BlockSpec(memory_space=pltpu.MemorySpace.SMEM),
            scratch_shapes=[pltpu.VMEM((B, d0), jnp.float32),
                            pltpu.VMEM((B, d0), jnp.float32)],
        ),
        compiler_params=pltpu.CompilerParams(
            dimension_semantics=("arbitrary",),
            vmem_limit_bytes=vmem_limit),
        cost_estimate=pl.CostEstimate(
            flops=int(flops),
            transcendentals=int(2 * n_hidden * d0 + 4 * d_out_pad),
            bytes_accessed=int(bytes_accessed)),
    )(*args)
    return out[0, 0]


# ------------------------------- model glue ---------------------------------

def init_params(key, in_features, backbone_out, head_sizes):
    """Deterministic synthetic parameters, zero-padded to lane-dense (x128)
    widths.  Padding is zeros everywhere so padded lanes stay exactly zero
    through every layer (the loss math relies on this invariant)."""
    sizes = [backbone_out] + list(head_sizes)
    din_pad = _round_up(in_features, 128)
    pads = [_round_up(s, 128) for s in sizes]

    def pad2(a, rows, cols):
        return jnp.pad(a, ((0, rows - a.shape[0]), (0, cols - a.shape[1])))

    params = {}
    key, k1, k2 = jax.random.split(key, 3)
    bw = 0.02 * jax.random.normal(k1, (in_features, backbone_out), jnp.float32)
    bb = 0.02 * jax.random.normal(k2, (1, backbone_out), jnp.float32)
    params["backbone_w"] = pad2(bw, din_pad, pads[0]).astype(jnp.bfloat16)
    params["backbone_b"] = pad2(bb, 1, pads[0])

    hidden = []
    for i in range(len(sizes) - 2):
        key, k1, k2 = jax.random.split(key, 3)
        w = 0.05 * jax.random.normal(k1, (sizes[i], sizes[i + 1]), jnp.float32)
        b = 0.05 * jax.random.normal(k2, (1, sizes[i + 1]), jnp.float32)
        hidden.append({
            "w": pad2(w, pads[i], pads[i + 1]).astype(jnp.bfloat16),
            "b": pad2(b, 1, pads[i + 1]),
            "gamma": pad2(jnp.ones((1, sizes[i + 1]), jnp.float32),
                          1, pads[i + 1]),
            "beta": jnp.zeros((1, pads[i + 1]), jnp.float32),
        })
    params["hidden"] = hidden

    key, k1 = jax.random.split(key)
    wf = 0.05 * jax.random.normal(k1, (sizes[-2], sizes[-1]), jnp.float32)
    params["final_w"] = pad2(wf, pads[-2], pads[-1]).astype(jnp.bfloat16)
    return params


def build_forward(d_out_logical, sim_coeff, std_coeff, cov_coeff,
                  max_tile_k=1024):
    @jax.jit
    def forward(params, x_a, x_b):
        B = x_a.shape[0]
        assert B % 8 == 0, "batch must be a multiple of 8 (sublane tiling)"
        xa = x_a.reshape(B, -1)                    # flatten NCHW (free view)
        xb = x_b.reshape(B, -1)
        din = xa.shape[1]
        din_pad = params["backbone_w"].shape[0]
        assert din_pad == _round_up(din, 128)
        if din_pad != din:                         # only when Din % 128 != 0
            pad = ((0, 0), (0, din_pad - din))
            xa = jnp.pad(xa, pad)
            xb = jnp.pad(xb, pad)

        tile_k = min(max_tile_k, din_pad)
        while din_pad % tile_k != 0:
            tile_k //= 2

        return fused_vicreg(xa, xb, params,
                            d_out_logical=d_out_logical,
                            sim_coeff=sim_coeff, std_coeff=std_coeff,
                            cov_coeff=cov_coeff, tile_k=tile_k)

    return forward


# ---------------------------------- main ------------------------------------

if __name__ == "__main__":
    key = jax.random.PRNGKey(0)
    kx, ky, kp = jax.random.split(key, 3)

    B, C, H, W = 8, 4, 16, 16          # small NCHW inputs
    backbone_output_size = 64
    head_sizes = [64, 32]              # head: 64 -> 64 (BN+ReLU) -> 32

    x_a = jax.random.normal(kx, (B, C, H, W), jnp.float32)
    x_b = jax.random.normal(ky, (B, C, H, W), jnp.float32)

    params = init_params(kp, C * H * W, backbone_output_size, head_sizes)
    forward = build_forward(head_sizes[-1], sim_coeff=25.0, std_coeff=25.0,
                            cov_coeff=1.0)

    loss = forward(params, x_a, x_b)
    jax.block_until_ready(loss)
    assert loss.shape == () and bool(jnp.isfinite(loss))
    print("KERNEL_OK")
</pallas_src>

<mosaic_0001>
module attributes {stable_mosaic.version = 11 : i64} {
  func.func @kernel(%arg0: i32, %arg1: memref<8x1024xf32, #tpu.memory_space<vmem>>, %arg2: memref<8x1024xf32, #tpu.memory_space<vmem>>, %arg3: memref<1024x128xbf16, #tpu.memory_space<vmem>>, %arg4: memref<1x128xf32, #tpu.memory_space<vmem>>, %arg5: memref<128x128xbf16, #tpu.memory_space<vmem>>, %arg6: memref<1x128xf32, #tpu.memory_space<vmem>>, %arg7: memref<1x128xf32, #tpu.memory_space<vmem>>, %arg8: memref<1x128xf32, #tpu.memory_space<vmem>>, %arg9: memref<128x128xbf16, #tpu.memory_space<vmem>>, %arg10: memref<1x1xf32, #tpu.memory_space<smem>>, %arg11: memref<8x128xf32, #tpu.memory_space<vmem>>, %arg12: memref<8x128xf32, #tpu.memory_space<vmem>>) attributes {dimension_semantics = [#tpu.dimension_semantics<arbitrary>], iteration_bounds = array<i64: 1>, scalar_prefetch = 0 : i64, scratch_operands = 2 : i64, tpu.core_type = #tpu.core_type<tc>, window_params = [{transform_indices = @transform_0, window_bounds = array<i64: 8, 1024>}, {transform_indices = @transform_1, window_bounds = array<i64: 8, 1024>}, {transform_indices = @transform_2, window_bounds = array<i64: 1024, 128>}, {pipeline_mode = #tpu.pipeline_mode<synchronous>, transform_indices = @transform_3, window_bounds = array<i64: 1, 128>}, {pipeline_mode = #tpu.pipeline_mode<synchronous>, transform_indices = @transform_4, window_bounds = array<i64: 128, 128>}, {pipeline_mode = #tpu.pipeline_mode<synchronous>, transform_indices = @transform_5, window_bounds = array<i64: 1, 128>}, {pipeline_mode = #tpu.pipeline_mode<synchronous>, transform_indices = @transform_6, window_bounds = array<i64: 1, 128>}, {pipeline_mode = #tpu.pipeline_mode<synchronous>, transform_indices = @transform_7, window_bounds = array<i64: 1, 128>}, {pipeline_mode = #tpu.pipeline_mode<synchronous>, transform_indices = @transform_8, window_bounds = array<i64: 128, 128>}, {transform_indices = @transform_9, window_bounds = array<i64: 1, 1>}]} {
    %c0_i32 = arith.constant 0 : i32
    %0 = arith.cmpi eq, %arg0, %c0_i32 : i32
    %1 = arith.extui %0 : i1 to i32
    %c0_i32_0 = arith.constant 0 : i32
    %2 = arith.cmpi ne, %1, %c0_i32_0 : i32
    scf.if %2 {
      %cst_17 = arith.constant 0.000000e+00 : f32
      %19 = vector.broadcast %cst_17 : f32 to vector<8x128xf32>
      %c0_18 = arith.constant 0 : index
      %c0_19 = arith.constant 0 : index
      %20 = vector.load %arg11[%c0_18, %c0_19] : memref<8x128xf32, #tpu.memory_space<vmem>>, vector<8x128xf32>
      tpu.vector_store %arg11[%c0_18, %c0_19], %19 {strides = array<i32>} : memref<8x128xf32, #tpu.memory_space<vmem>>, vector<8x128xf32>,
      %cst_20 = arith.constant 0.000000e+00 : f32
      %21 = vector.broadcast %cst_20 : f32 to vector<8x128xf32>
      %c0_21 = arith.constant 0 : index
      %c0_22 = arith.constant 0 : index
      %22 = vector.load %arg12[%c0_21, %c0_22] : memref<8x128xf32, #tpu.memory_space<vmem>>, vector<8x128xf32>
      tpu.vector_store %arg12[%c0_21, %c0_22], %21 {strides = array<i32>} : memref<8x128xf32, #tpu.memory_space<vmem>>, vector<8x128xf32>,
    } else {
    }
    %c0 = arith.constant 0 : index
    %c0_1 = arith.constant 0 : index
    %3 = vector.load %arg3[%c0, %c0_1] : memref<1024x128xbf16, #tpu.memory_space<vmem>>, vector<1024x128xbf16>
    %c0_2 = arith.constant 0 : index
    %c0_3 = arith.constant 0 : index
    %4 = vector.load %arg11[%c0_2, %c0_3] : memref<8x128xf32, #tpu.memory_space<vmem>>, vector<8x128xf32>
    %c0_4 = arith.constant 0 : index
    %c0_5 = arith.constant 0 : index
    %5 = vector.load %arg1[%c0_4, %c0_5] : memref<8x1024xf32, #tpu.memory_space<vmem>>, vector<8x1024xf32>
    %6 = arith.truncf %5 : vector<8x1024xf32> to vector<8x1024xbf16>
    %cst = arith.constant dense<0.000000e+00> : vector<8x128xf32>
    %7 = tpu.matmul %6, %3, %cst {dimension_numbers = #tpu.dot_dimension_numbers<[1], [0], [0], [1], [0, 0, 1, 1], [], []>} : vector<8x1024xbf16>, vector<1024x128xbf16>, vector<8x128xf32> -> vector<8x128xf32>
    %8 = arith.addf %4, %7 : vector<8x128xf32>
    %c0_6 = arith.constant 0 : index
    %c0_7 = arith.constant 0 : index
    %9 = vector.load %arg11[%c0_6, %c0_7] : memref<8x128xf32, #tpu.memory_space<vmem>>, vector<8x128xf32>
    tpu.vector_store %arg11[%c0_6, %c0_7], %8 {strides = array<i32>} : memref<8x128xf32, #tpu.memory_space<vmem>>, vector<8x128xf32>,
    %c0_8 = arith.constant 0 : index
    %c0_9 = arith.constant 0 : index
    %10 = vector.load %arg12[%c0_8, %c0_9] : memref<8x128xf32, #tpu.memory_space<vmem>>, vector<8x128xf32>
    %c0_10 = arith.constant 0 : index
    %c0_11 = arith.constant 0 : index
    %11 = vector.load %arg2[%c0_10, %c0_11] : memref<8x1024xf32, #tpu.memory_space<vmem>>, vector<8x1024xf32>
    %12 = arith.truncf %11 : vector<8x1024xf32> to vector<8x1024xbf16>
    %cst_12 = arith.constant dense<0.000000e+00> : vector<8x128xf32>
    %13 = tpu.matmul %12, %3, %cst_12 {dimension_numbers = #tpu.dot_dimension_numbers<[1], [0], [0], [1], [0, 0, 1, 1], [], []>} : vector<8x1024xbf16>, vector<1024x128xbf16>, vector<8x128xf32> -> vector<8x128xf32>
    %14 = arith.addf %10, %13 : vector<8x128xf32>
    %c0_13 = arith.constant 0 : index
    %c0_14 = arith.constant 0 : index
    %15 = vector.load %arg12[%c0_13, %c0_14] : memref<8x128xf32, #tpu.memory_space<vmem>>, vector<8x128xf32>
    tpu.vector_store %arg12[%c0_13, %c0_14], %14 {strides = array<i32>} : memref<8x128xf32, #tpu.memory_space<vmem>>, vector<8x128xf32>,
    %c0_i32_15 = arith.constant 0 : i32
    %16 = arith.cmpi eq, %arg0, %c0_i32_15 : i32
    %17 = arith.extui %16 : i1 to i32
    %c0_i32_16 = arith.constant 0 : i32
    %18 = arith.cmpi ne, %17, %c0_i32_16 : i32
    scf.if %18 {
      %c0_17 = arith.constant 0 : index
      %c0_18 = arith.constant 0 : index
      %19 = vector.load %arg11[%c0_17, %c0_18] : memref<8x128xf32, #tpu.memory_space<vmem>>, vector<8x128xf32>
      %c0_19 = arith.constant 0 : index
      %c0_20 = arith.constant 0 : index
      %20 = vector.load %arg4[%c0_19, %c0_20] : memref<1x128xf32, #tpu.memory_space<vmem>>, vector<1x128xf32>
      %21 = vector.broadcast %20 : vector<1x128xf32> to vector<8x128xf32>
      %22 = arith.addf %19, %21 : vector<8x128xf32>
      %c0_21 = arith.constant 0 : index
      %c0_22 = arith.constant 0 : index
      %23 = vector.load %arg5[%c0_21, %c0_22] : memref<128x128xbf16, #tpu.memory_space<vmem>>, vector<128x128xbf16>
      %c0_23 = arith.constant 0 : index
      %c0_24 = arith.constant 0 : index
      %24 = vector.load %arg6[%c0_23, %c0_24] : memref<1x128xf32, #tpu.memory_space<vmem>>, vector<1x128xf32>
      %c0_25 = arith.constant 0 : index
      %c0_26 = arith.constant 0 : index
      %25 = vector.load %arg7[%c0_25, %c0_26] : memref<1x128xf32, #tpu.memory_space<vmem>>, vector<1x128xf32>
      %c0_27 = arith.constant 0 : index
      %c0_28 = arith.constant 0 : index
      %26 = vector.load %arg8[%c0_27, %c0_28] : memref<1x128xf32, #tpu.memory_space<vmem>>, vector<1x128xf32>
      %27 = arith.truncf %22 : vector<8x128xf32> to vector<8x128xbf16>
      %cst_29 = arith.constant dense<0.000000e+00> : vector<8x128xf32>
      %28 = tpu.matmul %27, %23, %cst_29 {dimension_numbers = #tpu.dot_dimension_numbers<[1], [0], [0], [1], [0, 0, 1, 1], [], []>} : vector<8x128xbf16>, vector<128x128xbf16>, vector<8x128xf32> -> vector<8x128xf32>
      %29 = vector.broadcast %24 : vector<1x128xf32> to vector<8x128xf32>
      %30 = arith.addf %28, %29 : vector<8x128xf32>
      %cst_30 = arith.constant dense<0.000000e+00> : vector<128xf32>
      %31 = vector.multi_reduction <add>, %30, %cst_30 [0] : vector<8x128xf32> to vector<128xf32>
      %32 = vector.shape_cast %31 : vector<128xf32> to vector<1x128xf32>
      %cst_31 = arith.constant 8.000000e+00 : f32
      %33 = vector.broadcast %cst_31 : f32 to vector<1x128xf32>
      %34 = arith.divf %32, %33 : vector<1x128xf32>
      %35 = vector.broadcast %34 : vector<1x128xf32> to vector<8x128xf32>
      %36 = arith.subf %30, %35 : vector<8x128xf32>
      %37 = arith.mulf %36, %36 : vector<8x128xf32>
      %cst_32 = arith.constant dense<0.000000e+00> : vector<128xf32>
      %38 = vector.multi_reduction <add>, %37, %cst_32 [0] : vector<8x128xf32> to vector<128xf32>
      %39 = vector.shape_cast %38 : vector<128xf32> to vector<1x128xf32>
      %cst_33 = arith.constant 8.000000e+00 : f32
      %40 = vector.broadcast %cst_33 : f32 to vector<1x128xf32>
      %41 = arith.divf %39, %40 : vector<1x128xf32>
      %cst_34 = arith.constant 9.99999974E-6 : f32
      %42 = vector.broadcast %cst_34 : f32 to vector<1x128xf32>
      %43 = arith.addf %41, %42 : vector<1x128xf32>
      %44 = math.rsqrt %43 : vector<1x128xf32>
      %45 = vector.broadcast %44 : vector<1x128xf32> to vector<8x128xf32>
      %46 = arith.mulf %36, %45 : vector<8x128xf32>
      %47 = vector.broadcast %25 : vector<1x128xf32> to vector<8x128xf32>
      %48 = arith.mulf %46, %47 : vector<8x128xf32>
      %49 = vector.broadcast %26 : vector<1x128xf32> to vector<8x128xf32>
      %50 = arith.addf %48, %49 : vector<8x128xf32>
      %cst_35 = arith.constant 0.000000e+00 : f32
      %51 = vector.broadcast %cst_35 : f32 to vector<8x128xf32>
      %52 = arith.maximumf %50, %51 : vector<8x128xf32>
      %c0_36 = arith.constant 0 : index
      %c0_37 = arith.constant 0 : index
      %53 = vector.load %arg9[%c0_36, %c0_37] : memref<128x128xbf16, #tpu.memory_space<vmem>>, vector<128x128xbf16>
      %54 = arith.truncf %52 : vector<8x128xf32> to vector<8x128xbf16>
      %cst_38 = arith.constant dense<0.000000e+00> : vector<8x128xf32>
      %55 = tpu.matmul %54, %53, %cst_38 {dimension_numbers = #tpu.dot_dimension_numbers<[1], [0], [0], [1], [0, 0, 1, 1], [], []>} : vector<8x128xbf16>, vector<128x128xbf16>, vector<8x128xf32> -> vector<8x128xf32>
      %c0_39 = arith.constant 0 : index
      %c0_40 = arith.constant 0 : index
      %56 = vector.load %arg12[%c0_39, %c0_40] : memref<8x128xf32, #tpu.memory_space<vmem>>, vector<8x128xf32>
      %c0_41 = arith.constant 0 : index
      %c0_42 = arith.constant 0 : index
      %57 = vector.load %arg4[%c0_41, %c0_42] : memref<1x128xf32, #tpu.memory_space<vmem>>, vector<1x128xf32>
      %58 = vector.broadcast %57 : vector<1x128xf32> to vector<8x128xf32>
      %59 = arith.addf %56, %58 : vector<8x128xf32>
      %c0_43 = arith.constant 0 : index
      %c0_44 = arith.constant 0 : index
      %60 = vector.load %arg5[%c0_43, %c0_44] : memref<128x128xbf16, #tpu.memory_space<vmem>>, vector<128x128xbf16>
      %c0_45 = arith.constant 0 : index
      %c0_46 = arith.constant 0 : index
      %61 = vector.load %arg6[%c0_45, %c0_46] : memref<1x128xf32, #tpu.memory_space<vmem>>, vector<1x128xf32>
      %c0_47 = arith.constant 0 : index
      %c0_48 = arith.constant 0 : index
      %62 = vector.load %arg7[%c0_47, %c0_48] : memref<1x128xf32, #tpu.memory_space<vmem>>, vector<1x128xf32>
      %c0_49 = arith.constant 0 : index
      %c0_50 = arith.constant 0 : index
      %63 = vector.load %arg8[%c0_49, %c0_50] : memref<1x128xf32, #tpu.memory_space<vmem>>, vector<1x128xf32>
      %64 = arith.truncf %59 : vector<8x128xf32> to vector<8x128xbf16>
      %cst_51 = arith.constant dense<0.000000e+00> : vector<8x128xf32>
      %65 = tpu.matmul %64, %60, %cst_51 {dimension_numbers = #tpu.dot_dimension_numbers<[1], [0], [0], [1], [0, 0, 1, 1], [], []>} : vector<8x128xbf16>, vector<128x128xbf16>, vector<8x128xf32> -> vector<8x128xf32>
      %66 = vector.broadcast %61 : vector<1x128xf32> to vector<8x128xf32>
      %67 = arith.addf %65, %66 : vector<8x128xf32>
      %cst_52 = arith.constant dense<0.000000e+00> : vector<128xf32>
      %68 = vector.multi_reduction <add>, %67, %cst_52 [0] : vector<8x128xf32> to vector<128xf32>
      %69 = vector.shape_cast %68 : vector<128xf32> to vector<1x128xf32>
      %cst_53 = arith.constant 8.000000e+00 : f32
      %70 = vector.broadcast %cst_53 : f32 to vector<1x128xf32>
      %71 = arith.divf %69, %70 : vector<1x128xf32>
      %72 = vector.broadcast %71 : vector<1x128xf32> to vector<8x128xf32>
      %73 = arith.subf %67, %72 : vector<8x128xf32>
      %74 = arith.mulf %73, %73 : vector<8x128xf32>
      %cst_54 = arith.constant dense<0.000000e+00> : vector<128xf32>
      %75 = vector.multi_reduction <add>, %74, %cst_54 [0] : vector<8x128xf32> to vector<128xf32>
      %76 = vector.shape_cast %75 : vector<128xf32> to vector<1x128xf32>
      %cst_55 = arith.constant 8.000000e+00 : f32
      %77 = vector.broadcast %cst_55 : f32 to vector<1x128xf32>
      %78 = arith.divf %76, %77 : vector<1x128xf32>
      %cst_56 = arith.constant 9.99999974E-6 : f32
      %79 = vector.broadcast %cst_56 : f32 to vector<1x128xf32>
      %80 = arith.addf %78, %79 : vector<1x128xf32>
      %81 = math.rsqrt %80 : vector<1x128xf32>
      %82 = vector.broadcast %81 : vector<1x128xf32> to vector<8x128xf32>
      %83 = arith.mulf %73, %82 : vector<8x128xf32>
      %84 = vector.broadcast %62 : vector<1x128xf32> to vector<8x128xf32>
      %85 = arith.mulf %83, %84 : vector<8x128xf32>
      %86 = vector.broadcast %63 : vector<1x128xf32> to vector<8x128xf32>
      %87 = arith.addf %85, %86 : vector<8x128xf32>
      %cst_57 = arith.constant 0.000000e+00 : f32
      %88 = vector.broadcast %cst_57 : f32 to vector<8x128xf32>
      %89 = arith.maximumf %87, %88 : vector<8x128xf32>
      %c0_58 = arith.constant 0 : index
      %c0_59 = arith.constant 0 : index
      %90 = vector.load %arg9[%c0_58, %c0_59] : memref<128x128xbf16, #tpu.memory_space<vmem>>, vector<128x128xbf16>
      %91 = arith.truncf %89 : vector<8x128xf32> to vector<8x128xbf16>
      %cst_60 = arith.constant dense<0.000000e+00> : vector<8x128xf32>
      %92 = tpu.matmul %91, %90, %cst_60 {dimension_numbers = #tpu.dot_dimension_numbers<[1], [0], [0], [1], [0, 0, 1, 1], [], []>} : vector<8x128xbf16>, vector<128x128xbf16>, vector<8x128xf32> -> vector<8x128xf32>
      %93 = arith.subf %55, %92 : vector<8x128xf32>
      %94 = arith.mulf %93, %93 : vector<8x128xf32>
      %95 = vector.shape_cast %94 : vector<8x128xf32> to vector<1x8x128xf32>
      %cst_61 = arith.constant dense<0.000000e+00> : vector<1xf32>
      %96 = vector.multi_reduction <add>, %95, %cst_61 [1, 2] : vector<1x8x128xf32> to vector<1xf32>
      %97 = vector.shape_cast %96 : vector<1xf32> to vector<1x1x1xf32>
      %98 = vector.extract %97[0, 0, 0] : f32 from vector<1x1x1xf32>
      %cst_62 = arith.constant 2.560000e+02 : f32
      %99 = arith.divf %98, %cst_62 : f32
      %cst_63 = arith.constant dense<0.000000e+00> : vector<128xf32>
      %100 = vector.multi_reduction <add>, %55, %cst_63 [0] : vector<8x128xf32> to vector<128xf32>
      %101 = vector.shape_cast %100 : vector<128xf32> to vector<1x128xf32>
      %cst_64 = arith.constant 8.000000e+00 : f32
      %102 = vector.broadcast %cst_64 : f32 to vector<1x128xf32>
      %103 = arith.divf %101, %102 : vector<1x128xf32>
      %104 = vector.broadcast %103 : vector<1x128xf32> to vector<8x128xf32>
      %105 = arith.subf %55, %104 : vector<8x128xf32>
      %cst_65 = arith.constant dense<0.000000e+00> : vector<128xf32>
      %106 = vector.multi_reduction <add>, %92, %cst_65 [0] : vector<8x128xf32> to vector<128xf32>
      %107 = vector.shape_cast %106 : vector<128xf32> to vector<1x128xf32>
      %cst_66 = arith.constant 8.000000e+00 : f32
      %108 = vector.broadcast %cst_66 : f32 to vector<1x128xf32>
      %109 = arith.divf %107, %108 : vector<1x128xf32>
      %110 = vector.broadcast %109 : vector<1x128xf32> to vector<8x128xf32>
      %111 = arith.subf %92, %110 : vector<8x128xf32>
      %112 = arith.mulf %105, %105 : vector<8x128xf32>
      %cst_67 = arith.constant dense<0.000000e+00> : vector<128xf32>
      %113 = vector.multi_reduction <add>, %112, %cst_67 [0] : vector<8x128xf32> to vector<128xf32>
      %114 = vector.shape_cast %113 : vector<128xf32> to vector<1x128xf32>
      %cst_68 = arith.constant 7.000000e+00 : f32
      %115 = vector.broadcast %cst_68 : f32 to vector<1x128xf32>
      %116 = arith.divf %114, %115 : vector<1x128xf32>
      %117 = arith.mulf %111, %111 : vector<8x128xf32>
      %cst_69 = arith.constant dense<0.000000e+00> : vector<128xf32>
      %118 = vector.multi_reduction <add>, %117, %cst_69 [0] : vector<8x128xf32> to vector<128xf32>
      %119 = vector.shape_cast %118 : vector<128xf32> to vector<1x128xf32>
      %cst_70 = arith.constant 7.000000e+00 : f32
      %120 = vector.broadcast %cst_70 : f32 to vector<1x128xf32>
      %121 = arith.divf %119, %120 : vector<1x128xf32>
      %cst_71 = arith.constant 9.99999974E-5 : f32
      %122 = vector.broadcast %cst_71 : f32 to vector<1x128xf32>
      %123 = arith.addf %116, %122 : vector<1x128xf32>
      %124 = math.sqrt %123 : vector<1x128xf32>
      %cst_72 = arith.constant 9.99999974E-5 : f32
      %125 = vector.broadcast %cst_72 : f32 to vector<1x128xf32>
      %126 = arith.addf %121, %125 : vector<1x128xf32>
      %127 = math.sqrt %126 : vector<1x128xf32>
      %128 = tpu.iota {dimensions = array<i32: 1>} : vector<1x128xi32>
      %c32_i32 = arith.constant 32 : i32
      %129 = vector.broadcast %c32_i32 : i32 to vector<1x128xi32>
      %130 = arith.cmpi slt, %128, %129 : vector<1x128xi32>
      %131 = arith.extui %130 : vector<1x128xi1> to vector<1x128xi32>
      %132 = arith.sitofp %131 : vector<1x128xi32> to vector<1x128xf32>
      %cst_73 = arith.constant 1.000000e+00 : f32
      %133 = vector.broadcast %cst_73 : f32 to vector<1x128xf32>
      %134 = arith.subf %133, %124 : vector<1x128xf32>
      %cst_74 = arith.constant 0.000000e+00 : f32
      %135 = vector.broadcast %cst_74 : f32 to vector<1x128xf32>
      %136 = arith.maximumf %134, %135 : vector<1x128xf32>
      %137 = arith.mulf %136, %132 : vector<1x128xf32>
      %138 = vector.shape_cast %137 : vector<1x128xf32> to vector<1x1x128xf32>
      %cst_75 = arith.constant dense<0.000000e+00> : vector<1xf32>
      %139 = vector.multi_reduction <add>, %138, %cst_75 [1, 2] : vector<1x1x128xf32> to vector<1xf32>
      %140 = vector.shape_cast %139 : vector<1xf32> to vector<1x1x1xf32>
      %141 = vector.extract %140[0, 0, 0] : f32 from vector<1x1x1xf32>
      %cst_76 = arith.constant 1.000000e+00 : f32
      %142 = vector.broadcast %cst_76 : f32 to vector<1x128xf32>
      %143 = arith.subf %142, %127 : vector<1x128xf32>
      %cst_77 = arith.constant 0.000000e+00 : f32
      %144 = vector.broadcast %cst_77 : f32 to vector<1x128xf32>
      %145 = arith.maximumf %143, %144 : vector<1x128xf32>
      %146 = arith.mulf %145, %132 : vector<1x128xf32>
      %147 = vector.shape_cast %146 : vector<1x128xf32> to vector<1x1x128xf32>
      %cst_78 = arith.constant dense<0.000000e+00> : vector<1xf32>
      %148 = vector.multi_reduction <add>, %147, %cst_78 [1, 2] : vector<1x1x128xf32> to vector<1xf32>
      %149 = vector.shape_cast %148 : vector<1xf32> to vector<1x1x1xf32>
      %150 = vector.extract %149[0, 0, 0] : f32 from vector<1x1x1xf32>
      %151 = arith.addf %141, %150 : f32
      %cst_79 = arith.constant 6.400000e+01 : f32
      %152 = arith.divf %151, %cst_79 : f32
      %cst_80 = arith.constant dense<0.000000e+00> : vector<8x8xf32>
      %153 = tpu.matmul %105, %105, %cst_80 {dimension_numbers = #tpu.dot_dimension_numbers<[1], [1], [0], [0], [0, 0, 1, 0], [], []>} : vector<8x128xf32>, vector<8x128xf32>, vector<8x8xf32> -> vector<8x8xf32>
      %cst_81 = arith.constant dense<0.000000e+00> : vector<8x8xf32>
      %154 = tpu.matmul %111, %111, %cst_81 {dimension_numbers = #tpu.dot_dimension_numbers<[1], [1], [0], [0], [0, 0, 1, 0], [], []>} : vector<8x128xf32>, vector<8x128xf32>, vector<8x8xf32> -> vector<8x8xf32>
      %155 = arith.mulf %153, %153 : vector<8x8xf32>
      %156 = vector.shape_cast %155 : vector<8x8xf32> to vector<1x8x8xf32>
      %cst_82 = arith.constant dense<0.000000e+00> : vector<1xf32>
      %157 = vector.multi_reduction <add>, %156, %cst_82 [1, 2] : vector<1x8x8xf32> to vector<1xf32>
      %158 = vector.shape_cast %157 : vector<1xf32> to vector<1x1x1xf32>
      %159 = vector.extract %158[0, 0, 0] : f32 from vector<1x1x1xf32>
      %cst_83 = arith.constant 0.0204081628 : f32
      %160 = arith.mulf %159, %cst_83 : f32
      %161 = arith.mulf %116, %116 : vector<1x128xf32>
      %162 = vector.shape_cast %161 : vector<1x128xf32> to vector<1x1x128xf32>
      %cst_84 = arith.constant dense<0.000000e+00> : vector<1xf32>
      %163 = vector.multi_reduction <add>, %162, %cst_84 [1, 2] : vector<1x1x128xf32> to vector<1xf32>
      %164 = vector.shape_cast %163 : vector<1xf32> to vector<1x1x1xf32>
      %165 = vector.extract %164[0, 0, 0] : f32 from vector<1x1x1xf32>
      %166 = arith.subf %160, %165 : f32
      %167 = arith.mulf %154, %154 : vector<8x8xf32>
      %168 = vector.shape_cast %167 : vector<8x8xf32> to vector<1x8x8xf32>
      %cst_85 = arith.constant dense<0.000000e+00> : vector<1xf32>
      %169 = vector.multi_reduction <add>, %168, %cst_85 [1, 2] : vector<1x8x8xf32> to vector<1xf32>
      %170 = vector.shape_cast %169 : vector<1xf32> to vector<1x1x1xf32>
      %171 = vector.extract %170[0, 0, 0] : f32 from vector<1x1x1xf32>
      %cst_86 = arith.constant 0.0204081628 : f32
      %172 = arith.mulf %171, %cst_86 : f32
      %173 = arith.mulf %121, %121 : vector<1x128xf32>
      %174 = vector.shape_cast %173 : vector<1x128xf32> to vector<1x1x128xf32>
      %cst_87 = arith.constant dense<0.000000e+00> : vector<1xf32>
      %175 = vector.multi_reduction <add>, %174, %cst_87 [1, 2] : vector<1x1x128xf32> to vector<1xf32>
      %176 = vector.shape_cast %175 : vector<1xf32> to vector<1x1x1xf32>
      %177 = vector.extract %176[0, 0, 0] : f32 from vector<1x1x1xf32>
      %178 = arith.subf %172, %177 : f32
      %179 = arith.addf %166, %178 : f32
      %cst_88 = arith.constant 3.200000e+01 : f32
      %180 = arith.divf %179, %cst_88 : f32
      %cst_89 = arith.constant 2.500000e+01 : f32
      %181 = arith.mulf %cst_89, %99 : f32
      %cst_90 = arith.constant 2.500000e+01 : f32
      %182 = arith.mulf %cst_90, %152 : f32
      %183 = arith.addf %181, %182 : f32
      %cst_91 = arith.constant 1.000000e+00 : f32
      %184 = arith.mulf %cst_91, %180 : f32
      %185 = arith.addf %183, %184 : f32
      %c0_92 = arith.constant 0 : index
      %c0_93 = arith.constant 0 : index
      %186 = memref.load %arg10[%c0_92, %c0_93] : memref<1x1xf32, #tpu.memory_space<smem>>
      memref.store %185, %arg10[%c0_92, %c0_93] : memref<1x1xf32, #tpu.memory_space<smem>>
    } else {
    }
    return
  }
  func.func @transform_0(%arg0: i32) -> (i32, i32) {
    %c0_i32 = arith.constant 0 : i32
    %c0_i32_0 = arith.constant 0 : i32
    return %c0_i32, %arg0 : i32, i32
  }
  func.func @transform_1(%arg0: i32) -> (i32, i32) {
    %c0_i32 = arith.constant 0 : i32
    %c0_i32_0 = arith.constant 0 : i32
    return %c0_i32, %arg0 : i32, i32
  }
  func.func @transform_2(%arg0: i32) -> (i32, i32) {
    %c0_i32 = arith.constant 0 : i32
    %c0_i32_0 = arith.constant 0 : i32
    return %arg0, %c0_i32 : i32, i32
  }
  func.func @transform_3(%arg0: i32) -> (i32, i32) {
    %c0_i32 = arith.constant 0 : i32
    %c0_i32_0 = arith.constant 0 : i32
    %c0_i32_1 = arith.constant 0 : i32
    return %c0_i32, %c0_i32_0 : i32, i32
  }
  func.func @transform_4(%arg0: i32) -> (i32, i32) {
    %c0_i32 = arith.constant 0 : i32
    %c0_i32_0 = arith.constant 0 : i32
    %c0_i32_1 = arith.constant 0 : i32
    return %c0_i32, %c0_i32_0 : i32, i32
  }
  func.func @transform_5(%arg0: i32) -> (i32, i32) {
    %c0_i32 = arith.constant 0 : i32
    %c0_i32_0 = arith.constant 0 : i32
    %c0_i32_1 = arith.constant 0 : i32
    return %c0_i32, %c0_i32_0 : i32, i32
  }
  func.func @transform_6(%arg0: i32) -> (i32, i32) {
    %c0_i32 = arith.constant 0 : i32
    %c0_i32_0 = arith.constant 0 : i32
    %c0_i32_1 = arith.constant 0 : i32
    return %c0_i32, %c0_i32_0 : i32, i32
  }
  func.func @transform_7(%arg0: i32) -> (i32, i32) {
    %c0_i32 = arith.constant 0 : i32
    %c0_i32_0 = arith.constant 0 : i32
    %c0_i32_1 = arith.constant 0 : i32
    return %c0_i32, %c0_i32_0 : i32, i32
  }
  func.func @transform_8(%arg0: i32) -> (i32, i32) {
    %c0_i32 = arith.constant 0 : i32
    %c0_i32_0 = arith.constant 0 : i32
    %c0_i32_1 = arith.constant 0 : i32
    return %c0_i32, %c0_i32_0 : i32, i32
  }
  func.func @transform_9(%arg0: i32) -> (i32, i32) {
    %c0_i32 = arith.constant 0 : i32
    %c0_i32_0 = arith.constant 0 : i32
    %c0_i32_1 = arith.constant 0 : i32
    return %c0_i32, %c0_i32_0 : i32, i32
  }
}

</mosaic_0001>

<llo_original>
// kernel: forward.1
$region0: #{forward.1}
  #allocation0 [shape = 'u32[]', space=smem, size = 0x4, offset = 0x4, fixed_abs, tag = 'smem constant byte address 0x4 - core index']
  #allocation1 [shape = 'u32[144,128]{1,0:T(1,128)}', space=vmem, size = 0x12000, scoped, tag = 'internal scratch']
  #allocation2 [shape = 'f32[8,128]{1,0:T(8,128)}', space=vmem, size = 0x1000, scoped, tag = 'scratch operand']
  #allocation3 [shape = 'f32[8,128]{1,0:T(8,128)}', space=vmem, size = 0x1000, scoped, tag = 'scratch operand']
  %s0 = inlined_call_operand.vmem [shape: f32[8,1024], index: 0, kind: input, shape index: {}]
  %s1 = inlined_call_operand.vmem [shape: f32[8,1024], index: 1, kind: input, shape index: {}]
  %s2 = inlined_call_operand.vmem [shape: bf16[1024,128], index: 2, kind: input, shape index: {}]
  %s3 = inlined_call_operand.vmem [shape: f32[1,128], index: 3, kind: input, shape index: {}]
  %s4 = inlined_call_operand.vmem [shape: bf16[128,128], index: 4, kind: input, shape index: {}]
  %s5 = inlined_call_operand.vmem [shape: f32[1,128], index: 5, kind: input, shape index: {}]
  %s6 = inlined_call_operand.vmem [shape: f32[1,128], index: 6, kind: input, shape index: {}]
  %s7 = inlined_call_operand.vmem [shape: f32[1,128], index: 7, kind: input, shape index: {}]
  %s8 = inlined_call_operand.vmem [shape: bf16[128,128], index: 8, kind: input, shape index: {}]
  %s9 = inlined_call_operand.hbm [shape: f32[1,1], index: 9, kind: output, shape index: {}]
  %s10 = sld [smem:[#allocation0]]
  $region54: #{forward.1} parent=0
    _
  %s12 = ssub.s32 1, %s10
  %s13 = scalar_select 0, %s12, %s10
  $region1: #{forward.1} parent=0
    #allocation4 [shape = 'u8[512]{0}', space=smem, size = 0x200, scoped, tag = 'output window, operand 0, single buffered']
    #allocation5 [shape = 's32[1]{0}', space=sflag, size = 0x4, scoped, tag = 'scoped memory for forward.1']
    %14 = vsyncpa [#allocation5], 0
    // Predicated region
    $region2: #{forward.1} parent=1 // pred_check
      _
    $region3: #{forward.1} parent=1 // pred_check_branch
      %16 = sbr.rel (0) target = $region5
    $region4: #{forward.1} parent=1 // pred_region
      _
    $region5: #{forward.1} parent=1 // pred_fallthru
      _
    // Predicated region
    $region6: #{forward.1} parent=1 // pred_check
      _
    $region7: #{forward.1} parent=1 // pred_check_branch
      %18 = sbr.rel (0) target = $region9
    $region8: #{forward.1} parent=1 // pred_region
      _
    $region9: #{forward.1} parent=1 // pred_fallthru
      _
    // Predicated region
    $region10: #{forward.1} parent=1 // pred_check
      _
    $region11: #{forward.1} parent=1 // pred_check_branch
      %20 = sbr.rel (0) target = $region13
    $region12: #{forward.1} parent=1 // pred_region
      _
    $region13: #{forward.1} parent=1 // pred_fallthru
      _
    // Predicated region
    $region14: #{forward.1} parent=1 // pred_check
      _
    $region15: #{forward.1} parent=1 // pred_check_branch
      %22 = sbr.rel (0) target = $region17
    $region16: #{forward.1} parent=1 // pred_region
      _
    $region17: #{forward.1} parent=1 // pred_fallthru
      _
    // Predicated region
    $region18: #{forward.1} parent=1 // pred_check
      _
    $region19: #{forward.1} parent=1 // pred_check_branch
      %24 = sbr.rel (0) target = $region21
    $region20: #{forward.1} parent=1 // pred_region
      _
    $region21: #{forward.1} parent=1 // pred_fallthru
      _
    // Predicated region
    $region22: #{forward.1} parent=1 // pred_check
      _
    $region23: #{forward.1} parent=1 // pred_check_branch
      %26 = sbr.rel (0) target = $region25
    $region24: #{forward.1} parent=1 // pred_region
      _
    $region25: #{forward.1} parent=1 // pred_fallthru
      _
    // Predicated region
    $region26: #{forward.1} parent=1 // pred_check
      _
    $region27: #{forward.1} parent=1 // pred_check_branch
      %28 = sbr.rel (0) target = $region29
    $region28: #{forward.1} parent=1 // pred_region
      _
    $region29: #{forward.1} parent=1 // pred_fallthru
      _
    // Predicated region
    $region30: #{forward.1} parent=1 // pred_check
      _
    $region31: #{forward.1} parent=1 // pred_check_branch
      %30 = sbr.rel (0) target = $region33
    $region32: #{forward.1} parent=1 // pred_region
      _
    $region33: #{forward.1} parent=1 // pred_fallthru
      _
    // Predicated region
    $region34: #{forward.1} parent=1 // pred_check
      _
    $region35: #{forward.1} parent=1 // pred_check_branch
      %32 = sbr.rel (0) target = $region37
    $region36: #{forward.1} parent=1 // pred_region
      _
    $region37: #{forward.1} parent=1 // pred_fallthru
      _
    %p34 = scmp.eq.s32.totalorder 0, 0
    // Predicated region
    $region38: #{forward.1} parent=1 // pred_check
      %p35 = pneg %p34
    $region39: #{forward.1} parent=1 // pred_check_branch
      %37 = sbr.rel (%p35) target = $region41
    $region40: #{forward.1} parent=1 // pred_region
      %38 = vst [vmem:[#allocation2] sm:$0xff] 0.0
      %39 = vst [vmem:[#allocation3] sm:$0xff] 0.0
    $region41: #{forward.1} parent=1 // pred_fallthru
      _
    %v40 = vld [vmem:[%s2] sm:$0xf]
    %v41 = vld [vmem:[%s2 + $0x4] sm:$0xf]
    %v42 = vld [vmem:[%s2 + $0x8] sm:$0xf]
    %v43 = vld [vmem:[%s2 + $0xc] sm:$0xf]
    %v44 = vld [vmem:[%s2 + $0x10] sm:$0xf]
    %v45 = vld [vmem:[%s2 + $0x14] sm:$0xf]
    %v46 = vld [vmem:[%s2 + $0x18] sm:$0xf]
    %v47 = vld [vmem:[%s2 + $0x1c] sm:$0xf]
    %v48 = vld [vmem:[%s2 + $0x20] sm:$0xf]
    %v49 = vld [vmem:[%s2 + $0x24] sm:$0xf]
    %v50 = vld [vmem:[%s2 + $0x28] sm:$0xf]
    %v51 = vld [vmem:[%s2 + $0x2c] sm:$0xf]
    %v52 = vld [vmem:[%s2 + $0x30] sm:$0xf]
    %v53 = vld [vmem:[%s2 + $0x34] sm:$0xf]
    %v54 = vld [vmem:[%s2 + $0x38] sm:$0xf]
    %v55 = vld [vmem:[%s2 + $0x3c] sm:$0xf]
    %v56 = vld [vmem:[%s2 + $0x40] sm:$0xf]
    %v57 = vld [vmem:[%s2 + $0x44] sm:$0xf]
    %v58 = vld [vmem:[%s2 + $0x48] sm:$0xf]
    %v59 = vld [vmem:[%s2 + $0x4c] sm:$0xf]
    %v60 = vld [vmem:[%s2 + $0x50] sm:$0xf]
    %v61 = vld [vmem:[%s2 + $0x54] sm:$0xf]
    %v62 = vld [vmem:[%s2 + $0x58] sm:$0xf]
    %v63 = vld [vmem:[%s2 + $0x5c] sm:$0xf]
    %v64 = vld [vmem:[%s2 + $0x60] sm:$0xf]
    %v65 = vld [vmem:[%s2 + $0x64] sm:$0xf]
    %v66 = vld [vmem:[%s2 + $0x68] sm:$0xf]
    %v67 = vld [vmem:[%s2 + $0x6c] sm:$0xf]
    %v68 = vld [vmem:[%s2 + $0x70] sm:$0xf]
    %v69 = vld [vmem:[%s2 + $0x74] sm:$0xf]
    %v70 = vld [vmem:[%s2 + $0x78] sm:$0xf]
    %v71 = vld [vmem:[%s2 + $0x7c] sm:$0xf]
    %v72 = vld [vmem:[%s2 + $0x80] sm:$0xf]
    %v73 = vld [vmem:[%s2 + $0x84] sm:$0xf]
    %v74 = vld [vmem:[%s2 + $0x88] sm:$0xf]
    %v75 = vld [vmem:[%s2 + $0x8c] sm:$0xf]
    %v76 = vld [vmem:[%s2 + $0x90] sm:$0xf]
    %v77 = vld [vmem:[%s2 + $0x94] sm:$0xf]
    %v78 = vld [vmem:[%s2 + $0x98] sm:$0xf]
    %v79 = vld [vmem:[%s2 + $0x9c] sm:$0xf]
    %v80 = vld [vmem:[%s2 + $0xa0] sm:$0xf]
    %v81 = vld [vmem:[%s2 + $0xa4] sm:$0xf]
    %v82 = vld [vmem:[%s2 + $0xa8] sm:$0xf]
    %v83 = vld [vmem:[%s2 + $0xac] sm:$0xf]
    %v84 = vld [vmem:[%s2 + $0xb0] sm:$0xf]
    %v85 = vld [vmem:[%s2 + $0xb4] sm:$0xf]
    %v86 = vld [vmem:[%s2 + $0xb8] sm:$0xf]
    %v87 = vld [vmem:[%s2 + $0xbc] sm:$0xf]
    %v88 = vld [vmem:[%s2 + $0xc0] sm:$0xf]
    %v89 = vld [vmem:[%s2 + $0xc4] sm:$0xf]
    %v90 = vld [vmem:[%s2 + $0xc8] sm:$0xf]
    %v91 = vld [vmem:[%s2 + $0xcc] sm:$0xf]
    %v92 = vld [vmem:[%s2 + $0xd0] sm:$0xf]
    %v93 = vld [vmem:[%s2 + $0xd4] sm:$0xf]
    %v94 = vld [vmem:[%s2 + $0xd8] sm:$0xf]
    %v95 = vld [vmem:[%s2 + $0xdc] sm:$0xf]
    %v96 = vld [vmem:[%s2 + $0xe0] sm:$0xf]
    %v97 = vld [vmem:[%s2 + $0xe4] sm:$0xf]
    %v98 = vld [vmem:[%s2 + $0xe8] sm:$0xf]
    %v99 = vld [vmem:[%s2 + $0xec] sm:$0xf]
    %v100 = vld [vmem:[%s2 + $0xf0] sm:$0xf]
    %v101 = vld [vmem:[%s2 + $0xf4] sm:$0xf]
    %v102 = vld [vmem:[%s2 + $0xf8] sm:$0xf]
    %v103 = vld [vmem:[%s2 + $0xfc] sm:$0xf]
    %v104 = vld [vmem:[%s2 + $0x100] sm:$0xf]
    %v105 = vld [vmem:[%s2 + $0x104] sm:$0xf]
    %v106 = vld [vmem:[%s2 + $0x108] sm:$0xf]
    %v107 = vld [vmem:[%s2 + $0x10c] sm:$0xf]
    %v108 = vld [vmem:[%s2 + $0x110] sm:$0xf]
    %v109 = vld [vmem:[%s2 + $0x114] sm:$0xf]
    %v110 = vld [vmem:[%s2 + $0x118] sm:$0xf]
    %v111 = vld [vmem:[%s2 + $0x11c] sm:$0xf]
    %v112 = vld [vmem:[%s2 + $0x120] sm:$0xf]
    %v113 = vld [vmem:[%s2 + $0x124] sm:$0xf]
    %v114 = vld [vmem:[%s2 + $0x128] sm:$0xf]
    %v115 = vld [vmem:[%s2 + $0x12c] sm:$0xf]
    %v116 = vld [vmem:[%s2 + $0x130] sm:$0xf]
    %v117 = vld [vmem:[%s2 + $0x134] sm:$0xf]
    %v118 = vld [vmem:[%s2 + $0x138] sm:$0xf]
    %v119 = vld [vmem:[%s2 + $0x13c] sm:$0xf]
    %v120 = vld [vmem:[%s2 + $0x140] sm:$0xf]
    %v121 = vld [vmem:[%s2 + $0x144] sm:$0xf]
    %v122 = vld [vmem:[%s2 + $0x148] sm:$0xf]
    %v123 = vld [vmem:[%s2 + $0x14c] sm:$0xf]
    %v124 = vld [vmem:[%s2 + $0x150] sm:$0xf]
    %v125 = vld [vmem:[%s2 + $0x154] sm:$0xf]
    %v126 = vld [vmem:[%s2 + $0x158] sm:$0xf]
    %v127 = vld [vmem:[%s2 + $0x15c] sm:$0xf]
    %v128 = vld [vmem:[%s2 + $0x160] sm:$0xf]
    %v129 = vld [vmem:[%s2 + $0x164] sm:$0xf]
    %v130 = vld [vmem:[%s2 + $0x168] sm:$0xf]
    %v131 = vld [vmem:[%s2 + $0x16c] sm:$0xf]
    %v132 = vld [vmem:[%s2 + $0x170] sm:$0xf]
    %v133 = vld [vmem:[%s2 + $0x174] sm:$0xf]
    %v134 = vld [vmem:[%s2 + $0x178] sm:$0xf]
    %v135 = vld [vmem:[%s2 + $0x17c] sm:$0xf]
    %v136 = vld [vmem:[%s2 + $0x180] sm:$0xf]
    %v137 = vld [vmem:[%s2 + $0x184] sm:$0xf]
    %v138 = vld [vmem:[%s2 + $0x188] sm:$0xf]
    %v139 = vld [vmem:[%s2 + $0x18c] sm:$0xf]
    %v140 = vld [vmem:[%s2 + $0x190] sm:$0xf]
    %v141 = vld [vmem:[%s2 + $0x194] sm:$0xf]
    %v142 = vld [vmem:[%s2 + $0x198] sm:$0xf]
    %v143 = vld [vmem:[%s2 + $0x19c] sm:$0xf]
    %v144 = vld [vmem:[%s2 + $0x1a0] sm:$0xf]
    %v145 = vld [vmem:[%s2 + $0x1a4] sm:$0xf]
    %v146 = vld [vmem:[%s2 + $0x1a8] sm:$0xf]
    %v147 = vld [vmem:[%s2 + $0x1ac] sm:$0xf]
    %v148 = vld [vmem:[%s2 + $0x1b0] sm:$0xf]
    %v149 = vld [vmem:[%s2 + $0x1b4] sm:$0xf]
    %v150 = vld [vmem:[%s2 + $0x1b8] sm:$0xf]
    %v151 = vld [vmem:[%s2 + $0x1bc] sm:$0xf]
    %v152 = vld [vmem:[%s2 + $0x1c0] sm:$0xf]
    %v153 = vld [vmem:[%s2 + $0x1c4] sm:$0xf]
    %v154 = vld [vmem:[%s2 + $0x1c8] sm:$0xf]
    %v155 = vld [vmem:[%s2 + $0x1cc] sm:$0xf]
    %v156 = vld [vmem:[%s2 + $0x1d0] sm:$0xf]
    %v157 = vld [vmem:[%s2 + $0x1d4] sm:$0xf]
    %v158 = vld [vmem:[%s2 + $0x1d8] sm:$0xf]
    %v159 = vld [vmem:[%s2 + $0x1dc] sm:$0xf]
    %v160 = vld [vmem:[%s2 + $0x1e0] sm:$0xf]
    %v161 = vld [vmem:[%s2 + $0x1e4] sm:$0xf]
    %v162 = vld [vmem:[%s2 + $0x1e8] sm:$0xf]
    %v163 = vld [vmem:[%s2 + $0x1ec] sm:$0xf]
    %v164 = vld [vmem:[%s2 + $0x1f0] sm:$0xf]
    %v165 = vld [vmem:[%s2 + $0x1f4] sm:$0xf]
    %v166 = vld [vmem:[%s2 + $0x1f8] sm:$0xf]
    %v167 = vld [vmem:[%s2 + $0x1fc] sm:$0xf]
    %v168 = vld [vmem:[#allocation2] sm:$0xff]
    %v169 = vld [vmem:[%s0] sm:$0xff]
    %v170 = vld [vmem:[%s0 + $0x8] sm:$0xff]
    %v171 = vld [vmem:[%s0 + $0x10] sm:$0xff]
    %v172 = vld [vmem:[%s0 + $0x18] sm:$0xff]
    %v173 = vld [vmem:[%s0 + $0x20] sm:$0xff]
    %v174 = vld [vmem:[%s0 + $0x28] sm:$0xff]
    %v175 = vld [vmem:[%s0 + $0x30] sm:$0xff]
    %v176 = vld [vmem:[%s0 + $0x38] sm:$0xff]
    %v177 = vpack.c.bf16 %v169, %v169
    %v178 = vpack.c.bf16 %v170, %v170
    %v179 = vpack.c.bf16 %v171, %v171
    %v180 = vpack.c.bf16 %v172, %v172
    %v181 = vpack.c.bf16 %v173, %v173
    %v182 = vpack.c.bf16 %v174, %v174
    %v183 = vpack.c.bf16 %v175, %v175
    %v184 = vpack.c.bf16 %v176, %v176
    %v313 = vunpack.c.l.b16 %v40
    %v314 = vunpack.c.l.b16 %v41
    %v315 = vunpack.c.l.b16 %v42
    %v316 = vunpack.c.l.b16 %v43
    %v317 = vunpack.c.l.b16 %v44
    %v318 = vunpack.c.l.b16 %v45
    %v319 = vunpack.c.l.b16 %v46
    %v320 = vunpack.c.l.b16 %v47
    %v321 = vunpack.c.l.b16 %v48
    %v322 = vunpack.c.l.b16 %v49
    %v323 = vunpack.c.l.b16 %v50
    %v324 = vunpack.c.l.b16 %v51
    %v325 = vunpack.c.l.b16 %v52
    %v326 = vunpack.c.l.b16 %v53
    %v327 = vunpack.c.l.b16 %v54
    %v328 = vunpack.c.l.b16 %v55
    %v329 = vunpack.c.l.b16 %v56
    %v330 = vunpack.c.l.b16 %v57
    %v331 = vunpack.c.l.b16 %v58
    %v332 = vunpack.c.l.b16 %v59
    %v333 = vunpack.c.l.b16 %v60
    %v334 = vunpack.c.l.b16 %v61
    %v335 = vunpack.c.l.b16 %v62
    %v336 = vunpack.c.l.b16 %v63
    %v337 = vunpack.c.l.b16 %v64
    %v338 = vunpack.c.l.b16 %v65
    %v339 = vunpack.c.l.b16 %v66
    %v340 = vunpack.c.l.b16 %v67
    %v341 = vunpack.c.l.b16 %v68
    %v342 = vunpack.c.l.b16 %v69
    %v343 = vunpack.c.l.b16 %v70
    %v344 = vunpack.c.l.b16 %v71
    %v345 = vunpack.c.l.b16 %v72
    %v346 = vunpack.c.l.b16 %v73
    %v347 = vunpack.c.l.b16 %v74
    %v348 = vunpack.c.l.b16 %v75
    %v349 = vunpack.c.l.b16 %v76
    %v350 = vunpack.c.l.b16 %v77
    %v351 = vunpack.c.l.b16 %v78
    %v352 = vunpack.c.l.b16 %v79
    %v353 = vunpack.c.l.b16 %v80
    %v354 = vunpack.c.l.b16 %v81
    %v355 = vunpack.c.l.b16 %v82
    %v356 = vunpack.c.l.b16 %v83
    %v357 = vunpack.c.l.b16 %v84
    %v358 = vunpack.c.l.b16 %v85
    %v359 = vunpack.c.l.b16 %v86
    %v360 = vunpack.c.l.b16 %v87
    %v361 = vunpack.c.l.b16 %v88
    %v362 = vunpack.c.l.b16 %v89
    %v363 = vunpack.c.l.b16 %v90
    %v364 = vunpack.c.l.b16 %v91
    %v365 = vunpack.c.l.b16 %v92
    %v366 = vunpack.c.l.b16 %v93
    %v367 = vunpack.c.l.b16 %v94
    %v368 = vunpack.c.l.b16 %v95
    %v369 = vunpack.c.l.b16 %v96
    %v370 = vunpack.c.l.b16 %v97
    %v371 = vunpack.c.l.b16 %v98
    %v372 = vunpack.c.l.b16 %v99
    %v373 = vunpack.c.l.b16 %v100
    %v374 = vunpack.c.l.b16 %v101
    %v375 = vunpack.c.l.b16 %v102
    %v376 = vunpack.c.l.b16 %v103
    %v377 = vunpack.c.l.b16 %v104
    %v378 = vunpack.c.l.b16 %v105
    %v379 = vunpack.c.l.b16 %v106
    %v380 = vunpack.c.l.b16 %v107
    %v381 = vunpack.c.l.b16 %v108
    %v382 = vunpack.c.l.b16 %v109
    %v383 = vunpack.c.l.b16 %v110
    %v384 = vunpack.c.l.b16 %v111
    %v385 = vunpack.c.l.b16 %v112
    %v386 = vunpack.c.l.b16 %v113
    %v387 = vunpack.c.l.b16 %v114
    %v388 = vunpack.c.l.b16 %v115
    %v389 = vunpack.c.l.b16 %v116
    %v390 = vunpack.c.l.b16 %v117
    %v391 = vunpack.c.l.b16 %v118
    %v392 = vunpack.c.l.b16 %v119
    %v393 = vunpack.c.l.b16 %v120
    %v394 = vunpack.c.l.b16 %v121
    %v395 = vunpack.c.l.b16 %v122
    %v396 = vunpack.c.l.b16 %v123
    %v397 = vunpack.c.l.b16 %v124
    %v398 = vunpack.c.l.b16 %v125
    %v399 = vunpack.c.l.b16 %v126
    %v400 = vunpack.c.l.b16 %v127
    %v401 = vunpack.c.l.b16 %v128
    %v402 = vunpack.c.l.b16 %v129
    %v403 = vunpack.c.l.b16 %v130
    %v404 = vunpack.c.l.b16 %v131
    %v405 = vunpack.c.l.b16 %v132
    %v406 = vunpack.c.l.b16 %v133
    %v407 = vunpack.c.l.b16 %v134
    %v408 = vunpack.c.l.b16 %v135
    %v409 = vunpack.c.l.b16 %v136
    %v410 = vunpack.c.l.b16 %v137
    %v411 = vunpack.c.l.b16 %v138
    %v412 = vunpack.c.l.b16 %v139
    %v413 = vunpack.c.l.b16 %v140
    %v414 = vunpack.c.l.b16 %v141
    %v415 = vunpack.c.l.b16 %v142
    %v416 = vunpack.c.l.b16 %v143
    %v417 = vunpack.c.l.b16 %v144
    %v418 = vunpack.c.l.b16 %v145
    %v419 = vunpack.c.l.b16 %v146
    %v420 = vunpack.c.l.b16 %v147
    %v421 = vunpack.c.l.b16 %v148
    %v422 = vunpack.c.l.b16 %v149
    %v423 = vunpack.c.l.b16 %v150
    %v424 = vunpack.c.l.b16 %v151
    %v425 = vunpack.c.l.b16 %v152
    %v426 = vunpack.c.l.b16 %v153
    %v427 = vunpack.c.l.b16 %v154
    %v428 = vunpack.c.l.b16 %v155
    %v429 = vunpack.c.l.b16 %v156
    %v430 = vunpack.c.l.b16 %v157
    %v431 = vunpack.c.l.b16 %v158
    %v432 = vunpack.c.l.b16 %v159
    %v433 = vunpack.c.l.b16 %v160
    %v434 = vunpack.c.l.b16 %v161
    %v435 = vunpack.c.l.b16 %v162
    %v436 = vunpack.c.l.b16 %v163
    %v437 = vunpack.c.l.b16 %v164
    %v438 = vunpack.c.l.b16 %v165
    %v439 = vunpack.c.l.b16 %v166
    %v440 = vunpack.c.l.b16 %v167
    %v441 = vpack.c.b16 %v314, %v313
    %v442 = vpack.c.b16 %v316, %v315
    %v443 = vpack.c.b16 %v318, %v317
    %v444 = vpack.c.b16 %v320, %v319
    %v445 = vpack.c.b16 %v322, %v321
    %v446 = vpack.c.b16 %v324, %v323
    %v447 = vpack.c.b16 %v326, %v325
    %v448 = vpack.c.b16 %v328, %v327
    %v449 = vpack.c.b16 %v330, %v329
    %v450 = vpack.c.b16 %v332, %v331
    %v451 = vpack.c.b16 %v334, %v333
    %v452 = vpack.c.b16 %v336, %v335
    %v453 = vpack.c.b16 %v338, %v337
    %v454 = vpack.c.b16 %v340, %v339
    %v455 = vpack.c.b16 %v342, %v341
    %v456 = vpack.c.b16 %v344, %v343
    %v457 = vpack.c.b16 %v346, %v345
    %v458 = vpack.c.b16 %v348, %v347
    %v459 = vpack.c.b16 %v350, %v349
    %v460 = vpack.c.b16 %v352, %v351
    %v461 = vpack.c.b16 %v354, %v353
    %v462 = vpack.c.b16 %v356, %v355
    %v463 = vpack.c.b16 %v358, %v357
    %v464 = vpack.c.b16 %v360, %v359
    %v465 = vpack.c.b16 %v362, %v361
    %v466 = vpack.c.b16 %v364, %v363
    %v467 = vpack.c.b16 %v366, %v365
    %v468 = vpack.c.b16 %v368, %v367
    %v469 = vpack.c.b16 %v370, %v369
    %v470 = vpack.c.b16 %v372, %v371
    %v471 = vpack.c.b16 %v374, %v373
    %v472 = vpack.c.b16 %v376, %v375
    %v473 = vpack.c.b16 %v378, %v377
    %v474 = vpack.c.b16 %v380, %v379
    %v475 = vpack.c.b16 %v382, %v381
    %v476 = vpack.c.b16 %v384, %v383
    %v477 = vpack.c.b16 %v386, %v385
    %v478 = vpack.c.b16 %v388, %v387
    %v479 = vpack.c.b16 %v390, %v389
    %v480 = vpack.c.b16 %v392, %v391
    %v481 = vpack.c.b16 %v394, %v393
    %v482 = vpack.c.b16 %v396, %v395
    %v483 = vpack.c.b16 %v398, %v397
    %v484 = vpack.c.b16 %v400, %v399
    %v485 = vpack.c.b16 %v402, %v401
    %v486 = vpack.c.b16 %v404, %v403
    %v487 = vpack.c.b16 %v406, %v405
    %v488 = vpack.c.b16 %v408, %v407
    %v489 = vpack.c.b16 %v410, %v409
    %v490 = vpack.c.b16 %v412, %v411
    %v491 = vpack.c.b16 %v414, %v413
    %v492 = vpack.c.b16 %v416, %v415
    %v493 = vpack.c.b16 %v418, %v417
    %v494 = vpack.c.b16 %v420, %v419
    %v495 = vpack.c.b16 %v422, %v421
    %v496 = vpack.c.b16 %v424, %v423
    %v497 = vpack.c.b16 %v426, %v425
    %v498 = vpack.c.b16 %v428, %v427
    %v499 = vpack.c.b16 %v430, %v429
    %v500 = vpack.c.b16 %v432, %v431
    %v501 = vpack.c.b16 %v434, %v433
    %v502 = vpack.c.b16 %v436, %v435
    %v503 = vpack.c.b16 %v438, %v437
    %v504 = vpack.c.b16 %v440, %v439
    %569 = vmatprep.subr.bf16.mxu0 0
    %570 = vmatpush1.bf16.msra.mxu0 %v448
    %571 = vmatprep.subr.bf16.mxu0 0
    %572 = vmatpush1.bf16.msra.mxu0 %v447
    %573 = vmatprep.subr.bf16.mxu0 0
    %574 = vmatpush1.bf16.msra.mxu0 %v446
    %575 = vmatprep.subr.bf16.mxu0 0
    %576 = vmatpush1.bf16.msra.mxu0 %v445
    %577 = vmatprep.subr.bf16.mxu0 0
    %578 = vmatpush1.bf16.msra.mxu0 %v444
    %579 = vmatprep.subr.bf16.mxu0 0
    %580 = vmatpush1.bf16.msra.mxu0 %v443
    %581 = vmatprep.subr.bf16.mxu0 0
    %582 = vmatpush1.bf16.msra.mxu0 %v442
    %583 = vmatprep.subr.bf16.mxu0 0
    %584 = vmatpush1.bf16.msra.mxu0 %v441
    %585 = vmatprep.subr.bf16.mxu0 0
    %586 = vmatpush2.bf16.msra.mxu0 %v456
    %587 = vmatprep.subr.bf16.mxu0 0
    %588 = vmatpush2.bf16.msra.mxu0 %v455
    %589 = vmatprep.subr.bf16.mxu0 0
    %590 = vmatpush2.bf16.msra.mxu0 %v454
    %591 = vmatprep.subr.bf16.mxu0 0
    %592 = vmatpush2.bf16.msra.mxu0 %v453
    %593 = vmatprep.subr.bf16.mxu0 0
    %594 = vmatpush2.bf16.msra.mxu0 %v452
    %595 = vmatprep.subr.bf16.mxu0 0
    %596 = vmatpush2.bf16.msra.mxu0 %v451
    %597 = vmatprep.subr.bf16.mxu0 0
    %598 = vmatpush2.bf16.msra.mxu0 %v450
    %599 = vmatprep.subr.bf16.mxu0 0
    %600 = vmatpush2.bf16.msra.mxu0 %v449
    %601 = vmatprep.mubr.bf16.mxu0 %v178
    %602 = vmatmul.mubr.bf16.gmra.mxu0 %v177
    %v603 = vpop.f32.mrf.mxu0
    %v604 = vadd.f32 0.0, %v603
    %v605 = vpop.f32.mrf.mxu0
    %v606 = vpop.f32.mrf.mxu0
    %v607 = vpop.f32.mrf.mxu0
    %608 = vdwg.mxu0
    %609 = vmatprep.subr.bf16.mxu0 0
    %610 = vmatpush1.bf16.msra.mxu0 %v464
    %611 = vmatprep.subr.bf16.mxu0 0
    %612 = vmatpush1.bf16.msra.mxu0 %v463
    %613 = vmatprep.subr.bf16.mxu0 0
    %614 = vmatpush1.bf16.msra.mxu0 %v462
    %615 = vmatprep.subr.bf16.mxu0 0
    %616 = vmatpush1.bf16.msra.mxu0 %v461
    %617 = vmatprep.subr.bf16.mxu0 0
    %618 = vmatpush1.bf16.msra.mxu0 %v460
    %619 = vmatprep.subr.bf16.mxu0 0
    %620 = vmatpush1.bf16.msra.mxu0 %v459
    %621 = vmatprep.subr.bf16.mxu0 0
    %622 = vmatpush1.bf16.msra.mxu0 %v458
    %623 = vmatprep.subr.bf16.mxu0 0
    %624 = vmatpush1.bf16.msra.mxu0 %v457
    %625 = vmatprep.subr.bf16.mxu0 0
    %626 = vmatpush2.bf16.msra.mxu0 %v472
    %627 = vmatprep.subr.bf16.mxu0 0
    %628 = vmatpush2.bf16.msra.mxu0 %v471
    %629 = vmatprep.subr.bf16.mxu0 0
    %630 = vmatpush2.bf16.msra.mxu0 %v470
    %631 = vmatprep.subr.bf16.mxu0 0
    %632 = vmatpush2.bf16.msra.mxu0 %v469
    %633 = vmatprep.subr.bf16.mxu0 0
    %634 = vmatpush2.bf16.msra.mxu0 %v468
    %635 = vmatprep.subr.bf16.mxu0 0
    %636 = vmatpush2.bf16.msra.mxu0 %v467
    %637 = vmatprep.subr.bf16.mxu0 0
    %638 = vmatpush2.bf16.msra.mxu0 %v466
    %639 = vmatprep.subr.bf16.mxu0 0
    %640 = vmatpush2.bf16.msra.mxu0 %v465
    %641 = vmatprep.mubr.bf16.mxu0 %v180
    %642 = vmatmul.mubr.bf16.gmra.mxu0 %v179
    %v643 = vpop.f32.mrf.mxu0
    %v644 = vadd.f32 %v604, %v643
    %v645 = vpop.f32.mrf.mxu0
    %v646 = vpop.f32.mrf.mxu0
    %v647 = vpop.f32.mrf.mxu0
    %648 = vdwg.mxu0
    %649 = vmatprep.subr.bf16.mxu0 0
    %650 = vmatpush1.bf16.msra.mxu0 %v480
    %651 = vmatprep.subr.bf16.mxu0 0
    %652 = vmatpush1.bf16.msra.mxu0 %v479
    %653 = vmatprep.subr.bf16.mxu0 0
    %654 = vmatpush1.bf16.msra.mxu0 %v478
    %655 = vmatprep.subr.bf16.mxu0 0
    %656 = vmatpush1.bf16.msra.mxu0 %v477
    %657 = vmatprep.subr.bf16.mxu0 0
    %658 = vmatpush1.bf16.msra.mxu0 %v476
    %659 = vmatprep.subr.bf16.mxu0 0
    %660 = vmatpush1.bf16.msra.mxu0 %v475
    %661 = vmatprep.subr.bf16.mxu0 0
    %662 = vmatpush1.bf16.msra.mxu0 %v474
    %663 = vmatprep.subr.bf16.mxu0 0
    %664 = vmatpush1.bf16.msra.mxu0 %v473
    %665 = vmatprep.subr.bf16.mxu0 0
    %666 = vmatpush2.bf16.msra.mxu0 %v488
    %667 = vmatprep.subr.bf16.mxu0 0
    %668 = vmatpush2.bf16.msra.mxu0 %v487
    %669 = vmatprep.subr.bf16.mxu0 0
    %670 = vmatpush2.bf16.msra.mxu0 %v486
    %671 = vmatprep.subr.bf16.mxu0 0
    %672 = vmatpush2.bf16.msra.mxu0 %v485
    %673 = vmatprep.subr.bf16.mxu0 0
    %674 = vmatpush2.bf16.msra.mxu0 %v484
    %675 = vmatprep.subr.bf16.mxu0 0
    %676 = vmatpush2.bf16.msra.mxu0 %v483
    %677 = vmatprep.subr.bf16.mxu0 0
    %678 = vmatpush2.bf16.msra.mxu0 %v482
    %679 = vmatprep.subr.bf16.mxu0 0
    %680 = vmatpush2.bf16.msra.mxu0 %v481
    %681 = vmatprep.mubr.bf16.mxu0 %v182
    %682 = vmatmul.mubr.bf16.gmra.mxu0 %v181
    %v683 = vpop.f32.mrf.mxu0
    %v684 = vadd.f32 %v644, %v683
    %v685 = vpop.f32.mrf.mxu0
    %v686 = vpop.f32.mrf.mxu0
    %v687 = vpop.f32.mrf.mxu0
    %688 = vdwg.mxu0
    %689 = vmatprep.subr.bf16.mxu0 0
    %690 = vmatpush1.bf16.msra.mxu0 %v496
    %691 = vmatprep.subr.bf16.mxu0 0
    %692 = vmatpush1.bf16.msra.mxu0 %v495
    %693 = vmatprep.subr.bf16.mxu0 0
    %694 = vmatpush1.bf16.msra.mxu0 %v494
    %695 = vmatprep.subr.bf16.mxu0 0
    %696 = vmatpush1.bf16.msra.mxu0 %v493
    %697 = vmatprep.subr.bf16.mxu0 0
    %698 = vmatpush1.bf16.msra.mxu0 %v492
    %699 = vmatprep.subr.bf16.mxu0 0
    %700 = vmatpush1.bf16.msra.mxu0 %v491
    %701 = vmatprep.subr.bf16.mxu0 0
    %702 = vmatpush1.bf16.msra.mxu0 %v490
    %703 = vmatprep.subr.bf16.mxu0 0
    %704 = vmatpush1.bf16.msra.mxu0 %v489
    %705 = vmatprep.subr.bf16.mxu0 0
    %706 = vmatpush2.bf16.msra.mxu0 %v504
    %707 = vmatprep.subr.bf16.mxu0 0
    %708 = vmatpush2.bf16.msra.mxu0 %v503
    %709 = vmatprep.subr.bf16.mxu0 0
    %710 = vmatpush2.bf16.msra.mxu0 %v502
    %711 = vmatprep.subr.bf16.mxu0 0
    %712 = vmatpush2.bf16.msra.mxu0 %v501
    %713 = vmatprep.subr.bf16.mxu0 0
    %714 = vmatpush2.bf16.msra.mxu0 %v500
    %715 = vmatprep.subr.bf16.mxu0 0
    %716 = vmatpush2.bf16.msra.mxu0 %v499
    %717 = vmatprep.subr.bf16.mxu0 0
    %718 = vmatpush2.bf16.msra.mxu0 %v498
    %719 = vmatprep.subr.bf16.mxu0 0
    %720 = vmatpush2.bf16.msra.mxu0 %v497
    %721 = vmatprep.mubr.bf16.mxu0 %v184
    %722 = vmatmul.mubr.bf16.gmra.mxu0 %v183
    %v723 = vpop.f32.mrf.mxu0
    %v724 = vadd.f32 %v684, %v723
    %v725 = vpop.f32.mrf.mxu0
    %v726 = vpop.f32.mrf.mxu0
    %v727 = vpop.f32.mrf.mxu0
    %728 = vdwg.mxu0
    %v729 = vadd.f32 %v168, %v724
    %730 = vst [vmem:[#allocation2] sm:$0xff] %v729
    %v731 = vld [vmem:[#allocation3] sm:$0xff]
    %v732 = vld [vmem:[%s1] sm:$0xff]
    %v733 = vld [vmem:[%s1 + $0x8] sm:$0xff]
    %v734 = vld [vmem:[%s1 + $0x10] sm:$0xff]
    %v735 = vld [vmem:[%s1 + $0x18] sm:$0xff]
    %v736 = vld [vmem:[%s1 + $0x20] sm:$0xff]
    %v737 = vld [vmem:[%s1 + $0x28] sm:$0xff]
    %v738 = vld [vmem:[%s1 + $0x30] sm:$0xff]
    %v739 = vld [vmem:[%s1 + $0x38] sm:$0xff]
    %v740 = vpack.c.bf16 %v732, %v732
    %v741 = vpack.c.bf16 %v733, %v733
    %v742 = vpack.c.bf16 %v734, %v734
    %v743 = vpack.c.bf16 %v735, %v735
    %v744 = vpack.c.bf16 %v736, %v736
    %v745 = vpack.c.bf16 %v737, %v737
    %v746 = vpack.c.bf16 %v738, %v738
    %v747 = vpack.c.bf16 %v739, %v739
    %748 = vmatprep.subr.bf16.mxu0 0
    %749 = vmatpush1.bf16.msra.mxu0 %v448
    %750 = vmatprep.subr.bf16.mxu0 0
    %751 = vmatpush1.bf16.msra.mxu0 %v447
    %752 = vmatprep.subr.bf16.mxu0 0
    %753 = vmatpush1.bf16.msra.mxu0 %v446
    %754 = vmatprep.subr.bf16.mxu0 0
    %755 = vmatpush1.bf16.msra.mxu0 %v445
    %756 = vmatprep.subr.bf16.mxu0 0
    %757 = vmatpush1.bf16.msra.mxu0 %v444
    %758 = vmatprep.subr.bf16.mxu0 0
    %759 = vmatpush1.bf16.msra.mxu0 %v443
    %760 = vmatprep.subr.bf16.mxu0 0
    %761 = vmatpush1.bf16.msra.mxu0 %v442
    %762 = vmatprep.subr.bf16.mxu0 0
    %763 = vmatpush1.bf16.msra.mxu0 %v441
    %764 = vmatprep.subr.bf16.mxu0 0
    %765 = vmatpush2.bf16.msra.mxu0 %v456
    %766 = vmatprep.subr.bf16.mxu0 0
    %767 = vmatpush2.bf16.msra.mxu0 %v455
    %768 = vmatprep.subr.bf16.mxu0 0
    %769 = vmatpush2.bf16.msra.mxu0 %v454
    %770 = vmatprep.subr.bf16.mxu0 0
    %771 = vmatpush2.bf16.msra.mxu0 %v453
    %772 = vmatprep.subr.bf16.mxu0 0
    %773 = vmatpush2.bf16.msra.mxu0 %v452
    %774 = vmatprep.subr.bf16.mxu0 0
    %775 = vmatpush2.bf16.msra.mxu0 %v451
    %776 = vmatprep.subr.bf16.mxu0 0
    %777 = vmatpush2.bf16.msra.mxu0 %v450
    %778 = vmatprep.subr.bf16.mxu0 0
    %779 = vmatpush2.bf16.msra.mxu0 %v449
    %780 = vmatprep.mubr.bf16.mxu0 %v741
    %781 = vmatmul.mubr.bf16.gmra.mxu0 %v740
    %v782 = vpop.f32.mrf.mxu0
    %v783 = vadd.f32 0.0, %v782
    %v784 = vpop.f32.mrf.mxu0
    %v785 = vpop.f32.mrf.mxu0
    %v786 = vpop.f32.mrf.mxu0
    %787 = vdwg.mxu0
    %788 = vmatprep.subr.bf16.mxu0 0
    %789 = vmatpush1.bf16.msra.mxu0 %v464
    %790 = vmatprep.subr.bf16.mxu0 0
    %791 = vmatpush1.bf16.msra.mxu0 %v463
    %792 = vmatprep.subr.bf16.mxu0 0
    %793 = vmatpush1.bf16.msra.mxu0 %v462
    %794 = vmatprep.subr.bf16.mxu0 0
    %795 = vmatpush1.bf16.msra.mxu0 %v461
    %796 = vmatprep.subr.bf16.mxu0 0
    %797 = vmatpush1.bf16.msra.mxu0 %v460
    %798 = vmatprep.subr.bf16.mxu0 0
    %799 = vmatpush1.bf16.msra.mxu0 %v459
    %800 = vmatprep.subr.bf16.mxu0 0
    %801 = vmatpush1.bf16.msra.mxu0 %v458
    %802 = vmatprep.subr.bf16.mxu0 0
    %803 = vmatpush1.bf16.msra.mxu0 %v457
    %804 = vmatprep.subr.bf16.mxu0 0
    %805 = vmatpush2.bf16.msra.mxu0 %v472
    %806 = vmatprep.subr.bf16.mxu0 0
    %807 = vmatpush2.bf16.msra.mxu0 %v471
    %808 = vmatprep.subr.bf16.mxu0 0
    %809 = vmatpush2.bf16.msra.mxu0 %v470
    %810 = vmatprep.subr.bf16.mxu0 0
    %811 = vmatpush2.bf16.msra.mxu0 %v469
    %812 = vmatprep.subr.bf16.mxu0 0
    %813 = vmatpush2.bf16.msra.mxu0 %v468
    %814 = vmatprep.subr.bf16.mxu0 0
    %815 = vmatpush2.bf16.msra.mxu0 %v467
    %816 = vmatprep.subr.bf16.mxu0 0
    %817 = vmatpush2.bf16.msra.mxu0 %v466
    %818 = vmatprep.subr.bf16.mxu0 0
    %819 = vmatpush2.bf16.msra.mxu0 %v465
    %820 = vmatprep.mubr.bf16.mxu0 %v743
    %821 = vmatmul.mubr.bf16.gmra.mxu0 %v742
    %v822 = vpop.f32.mrf.mxu0
    %v823 = vadd.f32 %v783, %v822
    %v824 = vpop.f32.mrf.mxu0
    %v825 = vpop.f32.mrf.mxu0
    %v826 = vpop.f32.mrf.mxu0
    %827 = vdwg.mxu0
    %828 = vmatprep.subr.bf16.mxu0 0
    %829 = vmatpush1.bf16.msra.mxu0 %v480
    %830 = vmatprep.subr.bf16.mxu0 0
    %831 = vmatpush1.bf16.msra.mxu0 %v479
    %832 = vmatprep.subr.bf16.mxu0 0
    %833 = vmatpush1.bf16.msra.mxu0 %v478
    %834 = vmatprep.subr.bf16.mxu0 0
    %835 = vmatpush1.bf16.msra.mxu0 %v477
    %836 = vmatprep.subr.bf16.mxu0 0
    %837 = vmatpush1.bf16.msra.mxu0 %v476
    %838 = vmatprep.subr.bf16.mxu0 0
    %839 = vmatpush1.bf16.msra.mxu0 %v475
    %840 = vmatprep.subr.bf16.mxu0 0
    %841 = vmatpush1.bf16.msra.mxu0 %v474
    %842 = vmatprep.subr.bf16.mxu0 0
    %843 = vmatpush1.bf16.msra.mxu0 %v473
    %844 = vmatprep.subr.bf16.mxu0 0
    %845 = vmatpush2.bf16.msra.mxu0 %v488
    %846 = vmatprep.subr.bf16.mxu0 0
    %847 = vmatpush2.bf16.msra.mxu0 %v487
    %848 = vmatprep.subr.bf16.mxu0 0
    %849 = vmatpush2.bf16.msra.mxu0 %v486
    %850 = vmatprep.subr.bf16.mxu0 0
    %851 = vmatpush2.bf16.msra.mxu0 %v485
    %852 = vmatprep.subr.bf16.mxu0 0
    %853 = vmatpush2.bf16.msra.mxu0 %v484
    %854 = vmatprep.subr.bf16.mxu0 0
    %855 = vmatpush2.bf16.msra.mxu0 %v483
    %856 = vmatprep.subr.bf16.mxu0 0
    %857 = vmatpush2.bf16.msra.mxu0 %v482
    %858 = vmatprep.subr.bf16.mxu0 0
    %859 = vmatpush2.bf16.msra.mxu0 %v481
    %860 = vmatprep.mubr.bf16.mxu0 %v745
    %861 = vmatmul.mubr.bf16.gmra.mxu0 %v744
    %v862 = vpop.f32.mrf.mxu0
    %v863 = vadd.f32 %v823, %v862
    %v864 = vpop.f32.mrf.mxu0
    %v865 = vpop.f32.mrf.mxu0
    %v866 = vpop.f32.mrf.mxu0
    %867 = vdwg.mxu0
    %868 = vmatprep.subr.bf16.mxu0 0
    %869 = vmatpush1.bf16.msra.mxu0 %v496
    %870 = vmatprep.subr.bf16.mxu0 0
    %871 = vmatpush1.bf16.msra.mxu0 %v495
    %872 = vmatprep.subr.bf16.mxu0 0
    %873 = vmatpush1.bf16.msra.mxu0 %v494
    %874 = vmatprep.subr.bf16.mxu0 0
    %875 = vmatpush1.bf16.msra.mxu0 %v493
    %876 = vmatprep.subr.bf16.mxu0 0
    %877 = vmatpush1.bf16.msra.mxu0 %v492
    %878 = vmatprep.subr.bf16.mxu0 0
    %879 = vmatpush1.bf16.msra.mxu0 %v491
    %880 = vmatprep.subr.bf16.mxu0 0
    %881 = vmatpush1.bf16.msra.mxu0 %v490
    %882 = vmatprep.subr.bf16.mxu0 0
    %883 = vmatpush1.bf16.msra.mxu0 %v489
    %884 = vmatprep.subr.bf16.mxu0 0
    %885 = vmatpush2.bf16.msra.mxu0 %v504
    %886 = vmatprep.subr.bf16.mxu0 0
    %887 = vmatpush2.bf16.msra.mxu0 %v503
    %888 = vmatprep.subr.bf16.mxu0 0
    %889 = vmatpush2.bf16.msra.mxu0 %v502
    %890 = vmatprep.subr.bf16.mxu0 0
    %891 = vmatpush2.bf16.msra.mxu0 %v501
    %892 = vmatprep.subr.bf16.mxu0 0
    %893 = vmatpush2.bf16.msra.mxu0 %v500
    %894 = vmatprep.subr.bf16.mxu0 0
    %895 = vmatpush2.bf16.msra.mxu0 %v499
    %896 = vmatprep.subr.bf16.mxu0 0
    %897 = vmatpush2.bf16.msra.mxu0 %v498
    %898 = vmatprep.subr.bf16.mxu0 0
    %899 = vmatpush2.bf16.msra.mxu0 %v497
    %900 = vmatprep.mubr.bf16.mxu0 %v747
    %901 = vmatmul.mubr.bf16.gmra.mxu0 %v746
    %v902 = vpop.f32.mrf.mxu0
    %v903 = vadd.f32 %v863, %v902
    %v904 = vpop.f32.mrf.mxu0
    %v905 = vpop.f32.mrf.mxu0
    %v906 = vpop.f32.mrf.mxu0
    %907 = vdwg.mxu0
    %v908 = vadd.f32 %v731, %v903
    %909 = vst [vmem:[#allocation3] sm:$0xff] %v908
    // Predicated region
    $region42: #{forward.1} parent=1 // pred_check
      %p910 = pneg %p34
    $region43: #{forward.1} parent=1 // pred_check_branch
      %912 = sbr.rel (%p910) target = $region45
    $region44: #{forward.1} parent=1 // pred_region
      %v913 = vld [vmem:[#allocation2] sm:$0xff]
      %v914 = vld [vmem:[%s3] sm:$0x1]
      %v916 = vlaneseq
      %v917 = vshrl.u32 %v916, 7
      %v918 = vsub.s32 0, %v917
      %v919 = vrot.slane %v914, %v918
      %v921 = vadd.f32 %v913, %v919
      %v922 = vld [vmem:[%s4] sm:$0xf]
      %v923 = vld [vmem:[%s4 + $0x4] sm:$0xf]
      %v924 = vld [vmem:[%s4 + $0x8] sm:$0xf]
      %v925 = vld [vmem:[%s4 + $0xc] sm:$0xf]
      %v926 = vld [vmem:[%s4 + $0x10] sm:$0xf]
      %v927 = vld [vmem:[%s4 + $0x14] sm:$0xf]
      %v928 = vld [vmem:[%s4 + $0x18] sm:$0xf]
      %v929 = vld [vmem:[%s4 + $0x1c] sm:$0xf]
      %v930 = vld [vmem:[%s4 + $0x20] sm:$0xf]
      %v931 = vld [vmem:[%s4 + $0x24] sm:$0xf]
      %v932 = vld [vmem:[%s4 + $0x28] sm:$0xf]
      %v933 = vld [vmem:[%s4 + $0x2c] sm:$0xf]
      %v934 = vld [vmem:[%s4 + $0x30] sm:$0xf]
      %v935 = vld [vmem:[%s4 + $0x34] sm:$0xf]
      %v936 = vld [vmem:[%s4 + $0x38] sm:$0xf]
      %v937 = vld [vmem:[%s4 + $0x3c] sm:$0xf]
      %v938 = vld [vmem:[%s5] sm:$0x1]
      %v939 = vld [vmem:[%s6] sm:$0x1]
      %v940 = vld [vmem:[%s7] sm:$0x1]
      %v941 = vpack.c.bf16 %v921, %v921
      %v943 = vlaneseq
      %v944 = vshrl.u32 %v943, 7
      %v945 = vsub.s32 0, %v944
      %v946 = vrot.slane %v938, %v945
      %v964 = vunpack.c.l.b16 %v922
      %v965 = vunpack.c.l.b16 %v923
      %v966 = vunpack.c.l.b16 %v924
      %v967 = vunpack.c.l.b16 %v925
      %v968 = vunpack.c.l.b16 %v926
      %v969 = vunpack.c.l.b16 %v927
      %v970 = vunpack.c.l.b16 %v928
      %v971 = vunpack.c.l.b16 %v929
      %v972 = vunpack.c.l.b16 %v930
      %v973 = vunpack.c.l.b16 %v931
      %v974 = vunpack.c.l.b16 %v932
      %v975 = vunpack.c.l.b16 %v933
      %v976 = vunpack.c.l.b16 %v934
      %v977 = vunpack.c.l.b16 %v935
      %v978 = vunpack.c.l.b16 %v936
      %v979 = vunpack.c.l.b16 %v937
      %v980 = vpack.c.b16 %v965, %v964
      %v981 = vpack.c.b16 %v967, %v966
      %v982 = vpack.c.b16 %v969, %v968
      %v983 = vpack.c.b16 %v971, %v970
      %v984 = vpack.c.b16 %v973, %v972
      %v985 = vpack.c.b16 %v975, %v974
      %v986 = vpack.c.b16 %v977, %v976
      %v987 = vpack.c.b16 %v979, %v978
      %996 = vmatprep.subr.bf16.mxu0 0
      %997 = vmatpush1.bf16.msra.mxu0 %v987
      %998 = vmatprep.subr.bf16.mxu0 0
      %999 = vmatpush1.bf16.msra.mxu0 %v986
      %1000 = vmatprep.subr.bf16.mxu0 0
      %1001 = vmatpush1.bf16.msra.mxu0 %v985
      %1002 = vmatprep.subr.bf16.mxu0 0
      %1003 = vmatpush1.bf16.msra.mxu0 %v984
      %1004 = vmatprep.subr.bf16.mxu0 0
      %1005 = vmatpush1.bf16.msra.mxu0 %v983
      %1006 = vmatprep.subr.bf16.mxu0 0
      %1007 = vmatpush1.bf16.msra.mxu0 %v982
      %1008 = vmatprep.subr.bf16.mxu0 0
      %1009 = vmatpush1.bf16.msra.mxu0 %v981
      %1010 = vmatprep.subr.bf16.mxu0 0
      %1011 = vmatpush1.bf16.msra.mxu0 %v980
      %1012 = vmatprep.subr.bf16.mxu0 0
      %1013 = vmatpush2.bf16.msra.mxu0 0
      %1014 = vmatprep.subr.bf16.mxu0 0
      %1015 = vmatpush2.bf16.msra.mxu0 0
      %1016 = vmatprep.subr.bf16.mxu0 0
      %1017 = vmatpush2.bf16.msra.mxu0 0
      %1018 = vmatprep.subr.bf16.mxu0 0
      %1019 = vmatpush2.bf16.msra.mxu0 0
      %1020 = vmatprep.subr.bf16.mxu0 0
      %1021 = vmatpush2.bf16.msra.mxu0 0
      %1022 = vmatprep.subr.bf16.mxu0 0
      %1023 = vmatpush2.bf16.msra.mxu0 0
      %1024 = vmatprep.subr.bf16.mxu0 0
      %1025 = vmatpush2.bf16.msra.mxu0 0
      %1026 = vmatprep.subr.bf16.mxu0 0
      %1027 = vmatpush2.bf16.msra.mxu0 0
      %1028 = vmatprep.mubr.bf16.mxu0 0
      %1029 = vmatmul.mubr.bf16.gmra.mxu0 %v941
      %v1030 = vpop.f32.mrf.mxu0
      %v1031 = vadd.f32 %v946, %v1030
      %v1032 = vpop.f32.mrf.mxu0
      %v1033 = vpop.f32.mrf.mxu0
      %v1034 = vpop.f32.mrf.mxu0
      %1035 = vdwg.mxu0
      %v1036 = vrot.slane %v1031, 4
      %v1037 = vadd.f32 %v1031, %v1036
      %v1038 = vrot.slane %v1037, 2
      %v1039 = vadd.f32 %v1037, %v1038
      %v1040 = vrot.slane %v1039, 1
      %v1041 = vadd.f32 %v1039, %v1040
      %v1042 = vrcp.pop 8.0
      %v1043 = vmul.f32 %v1041, %v1042
      %v1044 = vsub.f32 %v1031, %v1043
      %v1045 = vmul.f32 %v1044, %v1044
      %v1046 = vrot.slane %v1045, 4
      %v1047 = vadd.f32 %v1045, %v1046
      %v1048 = vrot.slane %v1047, 2
      %v1049 = vadd.f32 %v1047, %v1048
      %v1050 = vrot.slane %v1049, 1
      %v1051 = vadd.f32 %v1049, %v1050
      %v1052 = vmul.f32 %v1051, %v1042
      %v1053 = vadd.f32 %v1052, 1e-05
      %v1054 = vrsqrt.pop %v1053
      %v1055 = vmul.f32 %v1044, %v1054
      %v1057 = vlaneseq
      %v1058 = vshrl.u32 %v1057, 7
      %v1059 = vsub.s32 0, %v1058
      %v1060 = vrot.slane %v939, %v1059
      %v1062 = vmul.f32 %v1055, %v1060
      %v1064 = vlaneseq
      %v1065 = vshrl.u32 %v1064, 7
      %v1066 = vsub.s32 0, %v1065
      %v1067 = vrot.slane %v940, %v1066
      %v1069 = vadd.f32 %v1062, %v1067
      %v1070 = vmax.f32 %v1069, 0.0
      %v1071 = vld [vmem:[%s8] sm:$0xf]
      %v1072 = vld [vmem:[%s8 + $0x4] sm:$0xf]
      %v1073 = vld [vmem:[%s8 + $0x8] sm:$0xf]
      %v1074 = vld [vmem:[%s8 + $0xc] sm:$0xf]
      %v1075 = vld [vmem:[%s8 + $0x10] sm:$0xf]
      %v1076 = vld [vmem:[%s8 + $0x14] sm:$0xf]
      %v1077 = vld [vmem:[%s8 + $0x18] sm:$0xf]
      %v1078 = vld [vmem:[%s8 + $0x1c] sm:$0xf]
      %v1079 = vld [vmem:[%s8 + $0x20] sm:$0xf]
      %v1080 = vld [vmem:[%s8 + $0x24] sm:$0xf]
      %v1081 = vld [vmem:[%s8 + $0x28] sm:$0xf]
      %v1082 = vld [vmem:[%s8 + $0x2c] sm:$0xf]
      %v1083 = vld [vmem:[%s8 + $0x30] sm:$0xf]
      %v1084 = vld [vmem:[%s8 + $0x34] sm:$0xf]
      %v1085 = vld [vmem:[%s8 + $0x38] sm:$0xf]
      %v1086 = vld [vmem:[%s8 + $0x3c] sm:$0xf]
      %v1087 = vpack.c.bf16 %v1070, %v1070
      %v1104 = vunpack.c.l.b16 %v1071
      %v1105 = vunpack.c.l.b16 %v1072
      %v1106 = vunpack.c.l.b16 %v1073
      %v1107 = vunpack.c.l.b16 %v1074
      %v1108 = vunpack.c.l.b16 %v1075
      %v1109 = vunpack.c.l.b16 %v1076
      %v1110 = vunpack.c.l.b16 %v1077
      %v1111 = vunpack.c.l.b16 %v1078
      %v1112 = vunpack.c.l.b16 %v1079
      %v1113 = vunpack.c.l.b16 %v1080
      %v1114 = vunpack.c.l.b16 %v1081
      %v1115 = vunpack.c.l.b16 %v1082
      %v1116 = vunpack.c.l.b16 %v1083
      %v1117 = vunpack.c.l.b16 %v1084
      %v1118 = vunpack.c.l.b16 %v1085
      %v1119 = vunpack.c.l.b16 %v1086
      %v1120 = vpack.c.b16 %v1105, %v1104
      %v1121 = vpack.c.b16 %v1107, %v1106
      %v1122 = vpack.c.b16 %v1109, %v1108
      %v1123 = vpack.c.b16 %v1111, %v1110
      %v1124 = vpack.c.b16 %v1113, %v1112
      %v1125 = vpack.c.b16 %v1115, %v1114
      %v1126 = vpack.c.b16 %v1117, %v1116
      %v1127 = vpack.c.b16 %v1119, %v1118
      %1136 = vmatprep.subr.bf16.mxu0 0
      %1137 = vmatpush1.bf16.msra.mxu0 %v1127
      %1138 = vmatprep.subr.bf16.mxu0 0
      %1139 = vmatpush1.bf16.msra.mxu0 %v1126
      %1140 = vmatprep.subr.bf16.mxu0 0
      %1141 = vmatpush1.bf16.msra.mxu0 %v1125
      %1142 = vmatprep.subr.bf16.mxu0 0
      %1143 = vmatpush1.bf16.msra.mxu0 %v1124
      %1144 = vmatprep.subr.bf16.mxu0 0
      %1145 = vmatpush1.bf16.msra.mxu0 %v1123
      %1146 = vmatprep.subr.bf16.mxu0 0
      %1147 = vmatpush1.bf16.msra.mxu0 %v1122
      %1148 = vmatprep.subr.bf16.mxu0 0
      %1149 = vmatpush1.bf16.msra.mxu0 %v1121
      %1150 = vmatprep.subr.bf16.mxu0 0
      %1151 = vmatpush1.bf16.msra.mxu0 %v1120
      %1152 = vmatprep.subr.bf16.mxu0 0
      %1153 = vmatpush2.bf16.msra.mxu0 0
      %1154 = vmatprep.subr.bf16.mxu0 0
      %1155 = vmatpush2.bf16.msra.mxu0 0
      %1156 = vmatprep.subr.bf16.mxu0 0
      %1157 = vmatpush2.bf16.msra.mxu0 0
      %1158 = vmatprep.subr.bf16.mxu0 0
      %1159 = vmatpush2.bf16.msra.mxu0 0
      %1160 = vmatprep.subr.bf16.mxu0 0
      %1161 = vmatpush2.bf16.msra.mxu0 0
      %1162 = vmatprep.subr.bf16.mxu0 0
      %1163 = vmatpush2.bf16.msra.mxu0 0
      %1164 = vmatprep.subr.bf16.mxu0 0
      %1165 = vmatpush2.bf16.msra.mxu0 0
      %1166 = vmatprep.subr.bf16.mxu0 0
      %1167 = vmatpush2.bf16.msra.mxu0 0
      %1168 = vmatprep.mubr.bf16.mxu0 0
      %1169 = vmatmul.mubr.bf16.gmra.mxu0 %v1087
      %v1170 = vpop.f32.mrf.mxu0
      %v1171 = vadd.f32 0.0, %v1170
      %v1172 = vpop.f32.mrf.mxu0
      %v1173 = vpop.f32.mrf.mxu0
      %v1174 = vpop.f32.mrf.mxu0
      %1175 = vdwg.mxu0
      %v1176 = vld [vmem:[#allocation3] sm:$0xff]
      %v1177 = vadd.f32 %v1176, %v919
      %v1178 = vpack.c.bf16 %v1177, %v1177
      %1179 = vmatprep.subr.bf16.mxu0 0
      %1180 = vmatpush1.bf16.msra.mxu0 %v987
      %1181 = vmatprep.subr.bf16.mxu0 0
      %1182 = vmatpush1.bf16.msra.mxu0 %v986
      %1183 = vmatprep.subr.bf16.mxu0 0
      %1184 = vmatpush1.bf16.msra.mxu0 %v985
      %1185 = vmatprep.subr.bf16.mxu0 0
      %1186 = vmatpush1.bf16.msra.mxu0 %v984
      %1187 = vmatprep.subr.bf16.mxu0 0
      %1188 = vmatpush1.bf16.msra.mxu0 %v983
      %1189 = vmatprep.subr.bf16.mxu0 0
      %1190 = vmatpush1.bf16.msra.mxu0 %v982
      %1191 = vmatprep.subr.bf16.mxu0 0
      %1192 = vmatpush1.bf16.msra.mxu0 %v981
      %1193 = vmatprep.subr.bf16.mxu0 0
      %1194 = vmatpush1.bf16.msra.mxu0 %v980
      %1195 = vmatprep.subr.bf16.mxu0 0
      %1196 = vmatpush2.bf16.msra.mxu0 0
      %1197 = vmatprep.subr.bf16.mxu0 0
      %1198 = vmatpush2.bf16.msra.mxu0 0
      %1199 = vmatprep.subr.bf16.mxu0 0
      %1200 = vmatpush2.bf16.msra.mxu0 0
      %1201 = vmatprep.subr.bf16.mxu0 0
      %1202 = vmatpush2.bf16.msra.mxu0 0
      %1203 = vmatprep.subr.bf16.mxu0 0
      %1204 = vmatpush2.bf16.msra.mxu0 0
      %1205 = vmatprep.subr.bf16.mxu0 0
      %1206 = vmatpush2.bf16.msra.mxu0 0
      %1207 = vmatprep.subr.bf16.mxu0 0
      %1208 = vmatpush2.bf16.msra.mxu0 0
      %1209 = vmatprep.subr.bf16.mxu0 0
      %1210 = vmatpush2.bf16.msra.mxu0 0
      %1211 = vmatprep.mubr.bf16.mxu0 0
      %1212 = vmatmul.mubr.bf16.gmra.mxu0 %v1178
      %v1213 = vpop.f32.mrf.mxu0
      %v1214 = vadd.f32 %v946, %v1213
      %v1215 = vpop.f32.mrf.mxu0
      %v1216 = vpop.f32.mrf.mxu0
      %v1217 = vpop.f32.mrf.mxu0
      %1218 = vdwg.mxu0
      %v1219 = vrot.slane %v1214, 4
      %v1220 = vadd.f32 %v1214, %v1219
      %v1221 = vrot.slane %v1220, 2
      %v1222 = vadd.f32 %v1220, %v1221
      %v1223 = vrot.slane %v1222, 1
      %v1224 = vadd.f32 %v1222, %v1223
      %v1225 = vmul.f32 %v1224, %v1042
      %v1226 = vsub.f32 %v1214, %v1225
      %v1227 = vmul.f32 %v1226, %v1226
      %v1228 = vrot.slane %v1227, 4
      %v1229 = vadd.f32 %v1227, %v1228
      %v1230 = vrot.slane %v1229, 2
      %v1231 = vadd.f32 %v1229, %v1230
      %v1232 = vrot.slane %v1231, 1
      %v1233 = vadd.f32 %v1231, %v1232
      %v1234 = vmul.f32 %v1233, %v1042
      %v1235 = vadd.f32 %v1234, 1e-05
      %v1236 = vrsqrt.pop %v1235
      %v1237 = vmul.f32 %v1226, %v1236
      %v1238 = vmul.f32 %v1237, %v1060
      %v1239 = vadd.f32 %v1238, %v1067
      %v1240 = vmax.f32 %v1239, 0.0
      %v1241 = vpack.c.bf16 %v1240, %v1240
      %1242 = vmatprep.subr.bf16.mxu0 0
      %1243 = vmatpush1.bf16.msra.mxu0 %v1127
      %1244 = vmatprep.subr.bf16.mxu0 0
      %1245 = vmatpush1.bf16.msra.mxu0 %v1126
      %1246 = vmatprep.subr.bf16.mxu0 0
      %1247 = vmatpush1.bf16.msra.mxu0 %v1125
      %1248 = vmatprep.subr.bf16.mxu0 0
      %1249 = vmatpush1.bf16.msra.mxu0 %v1124
      %1250 = vmatprep.subr.bf16.mxu0 0
      %1251 = vmatpush1.bf16.msra.mxu0 %v1123
      %1252 = vmatprep.subr.bf16.mxu0 0
      %1253 = vmatpush1.bf16.msra.mxu0 %v1122
      %1254 = vmatprep.subr.bf16.mxu0 0
      %1255 = vmatpush1.bf16.msra.mxu0 %v1121
      %1256 = vmatprep.subr.bf16.mxu0 0
      %1257 = vmatpush1.bf16.msra.mxu0 %v1120
      %1258 = vmatprep.subr.bf16.mxu0 0
      %1259 = vmatpush2.bf16.msra.mxu0 0
      %1260 = vmatprep.subr.bf16.mxu0 0
      %1261 = vmatpush2.bf16.msra.mxu0 0
      %1262 = vmatprep.subr.bf16.mxu0 0
      %1263 = vmatpush2.bf16.msra.mxu0 0
      %1264 = vmatprep.subr.bf16.mxu0 0
      %1265 = vmatpush2.bf16.msra.mxu0 0
      %1266 = vmatprep.subr.bf16.mxu0 0
      %1267 = vmatpush2.bf16.msra.mxu0 0
      %1268 = vmatprep.subr.bf16.mxu0 0
      %1269 = vmatpush2.bf16.msra.mxu0 0
      %1270 = vmatprep.subr.bf16.mxu0 0
      %1271 = vmatpush2.bf16.msra.mxu0 0
      %1272 = vmatprep.subr.bf16.mxu0 0
      %1273 = vmatpush2.bf16.msra.mxu0 0
      %1274 = vmatprep.mubr.bf16.mxu0 0
      %1275 = vmatmul.mubr.bf16.gmra.mxu0 %v1241
      %v1276 = vpop.f32.mrf.mxu0
      %v1277 = vadd.f32 0.0, %v1276
      %v1278 = vpop.f32.mrf.mxu0
      %v1279 = vpop.f32.mrf.mxu0
      %v1280 = vpop.f32.mrf.mxu0
      %1281 = vdwg.mxu0
      %v1282 = vsub.f32 %v1171, %v1277
      %v1283 = vmul.f32 %v1282, %v1282
      %1284 = vadd.xlane.f32.xlu0 %v1283
      %v1285 = vpop.xlane.xlu0 %1284
      %v1286 = vrot.slane %v1285, 4
      %v1287 = vadd.f32 %v1285, %v1286
      %v1288 = vrot.slane %v1287, 2
      %v1289 = vadd.f32 %v1287, %v1288
      %v1290 = vrot.slane %v1289, 1
      %v1291 = vadd.f32 %v1289, %v1290
      %s1292 = vtos %v1291
      %v1293 = vrcp.pop 256.0
      %s1294 = vtos %v1293
      %s1295 = smul.f32 %s1292, %s1294
      %v1296 = vrot.slane %v1171, 4
      %v1297 = vadd.f32 %v1171, %v1296
      %v1298 = vrot.slane %v1297, 2
      %v1299 = vadd.f32 %v1297, %v1298
      %v1300 = vrot.slane %v1299, 1
      %v1301 = vadd.f32 %v1299, %v1300
      %v1302 = vmul.f32 %v1301, %v1042
      %v1303 = vsub.f32 %v1171, %v1302
      %v1304 = vrot.slane %v1277, 4
      %v1305 = vadd.f32 %v1277, %v1304
      %v1306 = vrot.slane %v1305, 2
      %v1307 = vadd.f32 %v1305, %v1306
      %v1308 = vrot.slane %v1307, 1
      %v1309 = vadd.f32 %v1307, %v1308
      %v1310 = vmul.f32 %v1309, %v1042
      %v1311 = vsub.f32 %v1277, %v1310
      %v1312 = vmul.f32 %v1303, %v1303
      %v1313 = vrot.slane %v1312, 4
      %v1314 = vadd.f32 %v1312, %v1313
      %v1315 = vrot.slane %v1314, 2
      %v1316 = vadd.f32 %v1314, %v1315
      %v1317 = vrot.slane %v1316, 1
      %v1318 = vadd.f32 %v1316, %v1317
      %v1319 = vrcp.pop 7.0
      %v1320 = vmul.f32 %v1318, %v1319
      %v1321 = vmul.f32 %v1311, %v1311
      %v1322 = vrot.slane %v1321, 4
      %v1323 = vadd.f32 %v1321, %v1322
      %v1324 = vrot.slane %v1323, 2
      %v1325 = vadd.f32 %v1323, %v1324
      %v1326 = vrot.slane %v1325, 1
      %v1327 = vadd.f32 %v1325, %v1326
      %v1328 = vmul.f32 %v1327, %v1319
      %v1329 = vadd.f32 %v1320, 0.0001
      %v1330 = vrsqrt.pop %v1329
      %v1331 = vmul.f32 %v1329, %v1330
      %vm1332 = vcmp.eq.f32.partialorder %v1329, inf
      %v1333 = vsel %vm1332, %v1329, %v1331
      %vm1334 = vcmp.eq.f32.partialorder %v1329, 0.0
      %v1335 = vand.u32 %v1329, 2147483648
      %v1336 = vsel %vm1334, %v1335, %v1333
      %v1337 = vadd.f32 %v1328, 0.0001
      %v1338 = vrsqrt.pop %v1337
      %v1339 = vmul.f32 %v1337, %v1338
      %vm1340 = vcmp.eq.f32.partialorder %v1337, inf
      %v1341 = vsel %vm1340, %v1337, %v1339
      %vm1342 = vcmp.eq.f32.partialorder %v1337, 0.0
      %v1343 = vand.u32 %v1337, 2147483648
      %v1344 = vsel %vm1342, %v1343, %v1341
      %v1345 = vlaneseq
      %v1346 = vand.u32 %v1345, 127
      %vm1347 = vcmp.lt.s32.totalorder %v1346, 32
      %v1348 = vsel %vm1347, 1, 0
      %v1349 = vcvt.s32.f32 %v1348
      %v1350 = vsub.f32 1.0, %v1336
      %v1351 = vmax.f32 %v1350, 0.0
      %v1352 = vmul.f32 %v1351, %v1349
      %vm1353 = vcmask 1040384
      %v1354 = vsel %vm1353, %v1352, 0.0
      %1355 = vadd.xlane.f32.xlu0 %v1354
      %v1356 = vpop.xlane.xlu0 %1355
      %v1357 = vrot.slane %v1356, 4
      %v1358 = vadd.f32 %v1356, %v1357
      %v1359 = vrot.slane %v1358, 2
      %v1360 = vadd.f32 %v1358, %v1359
      %v1361 = vrot.slane %v1360, 1
      %v1362 = vadd.f32 %v1360, %v1361
      %s1363 = vtos %v1362
      %v1364 = vsub.f32 1.0, %v1344
      %v1365 = vmax.f32 %v1364, 0.0
      %v1366 = vmul.f32 %v1365, %v1349
      %v1367 = vsel %vm1353, %v1366, 0.0
      %1368 = vadd.xlane.f32.xlu0 %v1367
      %v1369 = vpop.xlane.xlu0 %1368
      %v1370 = vrot.slane %v1369, 4
      %v1371 = vadd.f32 %v1369, %v1370
      %v1372 = vrot.slane %v1371, 2
      %v1373 = vadd.f32 %v1371, %v1372
      %v1374 = vrot.slane %v1373, 1
      %v1375 = vadd.f32 %v1373, %v1374
      %s1376 = vtos %v1375
      %s1377 = sadd.f32 %s1363, %s1376
      %v1378 = vrcp.pop 64.0
      %s1379 = vtos %v1378
      %s1380 = smul.f32 %s1377, %s1379
      %1381 = vmatprep.subr.mxu0 0.0
      %1382 = vmatpush1.xpose.msra.mxu0 0.0
      %1383 = vmatprep.subr.mxu0 0.0
      %1384 = vmatpush1.xpose.msra.mxu0 0.0
      %1385 = vmatprep.subr.mxu0 0.0
      %1386 = vmatpush1.xpose.msra.mxu0 0.0
      %1387 = vmatprep.subr.mxu0 0.0
      %1388 = vmatpush1.xpose.msra.mxu0 0.0
      %1389 = vmatprep.subr.mxu0 0.0
      %1390 = vmatpush1.xpose.msra.mxu0 0.0
      %1391 = vmatprep.subr.mxu0 0.0
      %1392 = vmatpush1.xpose.msra.mxu0 0.0
      %1393 = vmatprep.subr.mxu0 0.0
      %1394 = vmatpush1.xpose.msra.mxu0 0.0
      %1395 = vmatprep.subr.mxu0 0.0
      %1396 = vmatpush1.xpose.msra.mxu0 0.0
      %1397 = vmatprep.subr.mxu0 0.0
      %1398 = vmatpush1.xpose.msra.mxu0 0.0
      %1399 = vmatprep.subr.mxu0 0.0
      %1400 = vmatpush1.xpose.msra.mxu0 0.0
      %1401 = vmatprep.subr.mxu0 0.0
      %1402 = vmatpush1.xpose.msra.mxu0 0.0
      %1403 = vmatprep.subr.mxu0 0.0
      %1404 = vmatpush1.xpose.msra.mxu0 0.0
      %1405 = vmatprep.subr.mxu0 0.0
      %1406 = vmatpush1.xpose.msra.mxu0 0.0
      %1407 = vmatprep.subr.mxu0 0.0
      %1408 = vmatpush1.xpose.msra.mxu0 0.0
      %1409 = vmatprep.subr.mxu0 0.0
      %1410 = vmatpush1.xpose.msra.mxu0 0.0
      %1411 = vmatprep.subr.mxu0 0.0
      %1412 = vmatpush1.xpose.msra.mxu0 %v1303
      %1413 = vmatprep.subr.mxu0 0.0
      %1414 = vmatpush2.xpose.msra.mxu0 0.0
      %1415 = vmatprep.subr.mxu0 0.0
      %1416 = vmatpush2.xpose.msra.mxu0 0.0
      %1417 = vmatprep.subr.mxu0 0.0
      %1418 = vmatpush2.xpose.msra.mxu0 0.0
      %1419 = vmatprep.subr.mxu0 0.0
      %1420 = vmatpush2.xpose.msra.mxu0 0.0
      %1421 = vmatprep.subr.mxu0 0.0
      %1422 = vmatpush2.xpose.msra.mxu0 0.0
      %1423 = vmatprep.subr.mxu0 0.0
      %1424 = vmatpush2.xpose.msra.mxu0 0.0
      %1425 = vmatprep.subr.mxu0 0.0
      %1426 = vmatpush2.xpose.msra.mxu0 0.0
      %1427 = vmatprep.subr.mxu0 0.0
      %1428 = vmatpush2.xpose.msra.mxu0 0.0
      %1429 = vmatprep.subr.mxu0 0.0
      %1430 = vmatpush2.xpose.msra.mxu0 0.0
      %1431 = vmatprep.subr.mxu0 0.0
      %1432 = vmatpush2.xpose.msra.mxu0 0.0
      %1433 = vmatprep.subr.mxu0 0.0
      %1434 = vmatpush2.xpose.msra.mxu0 0.0
      %1435 = vmatprep.subr.mxu0 0.0
      %1436 = vmatpush2.xpose.msra.mxu0 0.0
      %1437 = vmatprep.subr.mxu0 0.0
      %1438 = vmatpush2.xpose.msra.mxu0 0.0
      %1439 = vmatprep.subr.mxu0 0.0
      %1440 = vmatpush2.xpose.msra.mxu0 0.0
      %1441 = vmatprep.subr.mxu0 0.0
      %1442 = vmatpush2.xpose.msra.mxu0 0.0
      %1443 = vmatprep.subr.mxu0 0.0
      %1444 = vmatpush2.xpose.msra.mxu0 0.0
      %1445 = vmatprep.mubr.f32.mxu0 0.0
      %1446 = vmatmul.mubr.f32.gmra.mxu0 %v1303
      %v1447 = vpop.f32.mrf.mxu0
      %v1448 = vadd.f32 0.0, %v1447
      %v1449 = vpop.f32.mrf.mxu0
      %1450 = vdwg.mxu0
      %1451 = vmatprep.subr.mxu0 0.0
      %1452 = vmatpush1.xpose.msra.mxu0 0.0
      %1453 = vmatprep.subr.mxu0 0.0
      %1454 = vmatpush1.xpose.msra.mxu0 0.0
      %1455 = vmatprep.subr.mxu0 0.0
      %1456 = vmatpush1.xpose.msra.mxu0 0.0
      %1457 = vmatprep.subr.mxu0 0.0
      %1458 = vmatpush1.xpose.msra.mxu0 0.0
      %1459 = vmatprep.subr.mxu0 0.0
      %1460 = vmatpush1.xpose.msra.mxu0 0.0
      %1461 = vmatprep.subr.mxu0 0.0
      %1462 = vmatpush1.xpose.msra.mxu0 0.0
      %1463 = vmatprep.subr.mxu0 0.0
      %1464 = vmatpush1.xpose.msra.mxu0 0.0
      %1465 = vmatprep.subr.mxu0 0.0
      %1466 = vmatpush1.xpose.msra.mxu0 0.0
      %1467 = vmatprep.subr.mxu0 0.0
      %1468 = vmatpush1.xpose.msra.mxu0 0.0
      %1469 = vmatprep.subr.mxu0 0.0
      %1470 = vmatpush1.xpose.msra.mxu0 0.0
      %1471 = vmatprep.subr.mxu0 0.0
      %1472 = vmatpush1.xpose.msra.mxu0 0.0
      %1473 = vmatprep.subr.mxu0 0.0
      %1474 = vmatpush1.xpose.msra.mxu0 0.0
      %1475 = vmatprep.subr.mxu0 0.0
      %1476 = vmatpush1.xpose.msra.mxu0 0.0
      %1477 = vmatprep.subr.mxu0 0.0
      %1478 = vmatpush1.xpose.msra.mxu0 0.0
      %1479 = vmatprep.subr.mxu0 0.0
      %1480 = vmatpush1.xpose.msra.mxu0 0.0
      %1481 = vmatprep.subr.mxu0 0.0
      %1482 = vmatpush1.xpose.msra.mxu0 %v1311
      %1483 = vmatprep.subr.mxu0 0.0
      %1484 = vmatpush2.xpose.msra.mxu0 0.0
      %1485 = vmatprep.subr.mxu0 0.0
      %1486 = vmatpush2.xpose.msra.mxu0 0.0
      %1487 = vmatprep.subr.mxu0 0.0
      %1488 = vmatpush2.xpose.msra.mxu0 0.0
      %1489 = vmatprep.subr.mxu0 0.0
      %1490 = vmatpush2.xpose.msra.mxu0 0.0
      %1491 = vmatprep.subr.mxu0 0.0
      %1492 = vmatpush2.xpose.msra.mxu0 0.0
      %1493 = vmatprep.subr.mxu0 0.0
      %1494 = vmatpush2.xpose.msra.mxu0 0.0
      %1495 = vmatprep.subr.mxu0 0.0
      %1496 = vmatpush2.xpose.msra.mxu0 0.0
      %1497 = vmatprep.subr.mxu0 0.0
      %1498 = vmatpush2.xpose.msra.mxu0 0.0
      %1499 = vmatprep.subr.mxu0 0.0
      %1500 = vmatpush2.xpose.msra.mxu0 0.0
      %1501 = vmatprep.subr.mxu0 0.0
      %1502 = vmatpush2.xpose.msra.mxu0 0.0
      %1503 = vmatprep.subr.mxu0 0.0
      %1504 = vmatpush2.xpose.msra.mxu0 0.0
      %1505 = vmatprep.subr.mxu0 0.0
      %1506 = vmatpush2.xpose.msra.mxu0 0.0
      %1507 = vmatprep.subr.mxu0 0.0
      %1508 = vmatpush2.xpose.msra.mxu0 0.0
      %1509 = vmatprep.subr.mxu0 0.0
      %1510 = vmatpush2.xpose.msra.mxu0 0.0
      %1511 = vmatprep.subr.mxu0 0.0
      %1512 = vmatpush2.xpose.msra.mxu0 0.0
      %1513 = vmatprep.subr.mxu0 0.0
      %1514 = vmatpush2.xpose.msra.mxu0 0.0
      %1515 = vmatprep.mubr.f32.mxu0 0.0
      %1516 = vmatmul.mubr.f32.gmra.mxu0 %v1311
      %v1517 = vpop.f32.mrf.mxu0
      %v1518 = vadd.f32 0.0, %v1517
      %v1519 = vpop.f32.mrf.mxu0
      %1520 = vdwg.mxu0
      %v1521 = vmul.f32 %v1448, %v1448
      %vm1522 = vcmask 64512
      %v1523 = vsel %vm1522, %v1521, 0.0
      %1524 = vadd.xlane.f32.xlu0 %v1523
      %v1525 = vpop.xlane.xlu0 %1524
      %v1526 = vrot.slane %v1525, 4
      %v1527 = vadd.f32 %v1525, %v1526
      %v1528 = vrot.slane %v1527, 2
      %v1529 = vadd.f32 %v1527, %v1528
      %v1530 = vrot.slane %v1529, 1
      %v1531 = vadd.f32 %v1529, %v1530
      %s1532 = vtos %v1531
      %s1533 = smul.f32 %s1532, 0.020408163
      %v1534 = vmul.f32 %v1320, %v1320
      %v1535 = vsel %vm1353, %v1534, 0.0
      %1536 = vadd.xlane.f32.xlu0 %v1535
      %v1537 = vpop.xlane.xlu0 %1536
      %v1538 = vrot.slane %v1537, 4
      %v1539 = vadd.f32 %v1537, %v1538
      %v1540 = vrot.slane %v1539, 2
      %v1541 = vadd.f32 %v1539, %v1540
      %v1542 = vrot.slane %v1541, 1
      %v1543 = vadd.f32 %v1541, %v1542
      %s1544 = vtos %v1543
      %s1545 = ssub.f32 %s1533, %s1544
      %v1546 = vmul.f32 %v1518, %v1518
      %v1547 = vsel %vm1522, %v1546, 0.0
      %1548 = vadd.xlane.f32.xlu0 %v1547
      %v1549 = vpop.xlane.xlu0 %1548
      %v1550 = vrot.slane %v1549, 4
      %v1551 = vadd.f32 %v1549, %v1550
      %v1552 = vrot.slane %v1551, 2
      %v1553 = vadd.f32 %v1551, %v1552
      %v1554 = vrot.slane %v1553, 1
      %v1555 = vadd.f32 %v1553, %v1554
      %s1556 = vtos %v1555
      %s1557 = smul.f32 %s1556, 0.020408163
      %v1558 = vmul.f32 %v1328, %v1328
      %v1559 = vsel %vm1353, %v1558, 0.0
      %1560 = vadd.xlane.f32.xlu0 %v1559
      %v1561 = vpop.xlane.xlu0 %1560
      %v1562 = vrot.slane %v1561, 4
      %v1563 = vadd.f32 %v1561, %v1562
      %v1564 = vrot.slane %v1563, 2
      %v1565 = vadd.f32 %v1563, %v1564
      %v1566 = vrot.slane %v1565, 1
      %v1567 = vadd.f32 %v1565, %v1566
      %s1568 = vtos %v1567
      %s1569 = ssub.f32 %s1557, %s1568
      %s1570 = sadd.f32 %s1545, %s1569
      %v1571 = vrcp.pop 32.0
      %s1572 = vtos %v1571
      %s1573 = smul.f32 %s1570, %s1572
      %s1574 = smul.f32 %s1295, 25.0
      %s1575 = smul.f32 %s1380, 25.0
      %s1576 = sadd.f32 %s1574, %s1575
      %s1577 = sadd.f32 %s1576, %s1573
      %s1578 = scalar_lea.smem [#allocation4], 0
      %1579 = sst [smem:[%s1578]] %s1577
    $region45: #{forward.1} parent=1 // pred_fallthru
      _
    // Predicated region
    $region46: #{forward.1} parent=1 // pred_check
      _
    $region47: #{forward.1} parent=1 // pred_check_branch
      %1581 = sbr.rel (0) target = $region49
    $region48: #{forward.1} parent=1 // pred_region
      %s1583 = ssub.s32 16, 16
      %1584 = vsyncadd [#allocation5], %s1583
      %1587 = dma.smem_to_hbm [#allocation4], 16, %s9, [#allocation5]
    $region49: #{forward.1} parent=1 // pred_fallthru
      _
    // Predicated region
    $region50: #{forward.1} parent=1 // pred_check
      _
    $region51: #{forward.1} parent=1 // pred_check_branch
      %1589 = sbr.rel (0) target = $region53
    $region52: #{forward.1} parent=1 // pred_region
      %1590 = dma.done [#allocation5], 16
    $region53: #{forward.1} parent=1 // pred_fallthru
      _
    %1591 = sfence
    %1592 = vsyncpa [#allocation5], 1

</llo_original>
